<compile_context>
chip_gen: v7x
topology: tpu7x:2x2x1
jax: 0.10.0
libtpu: 0.0.40
codegen_flags: <defaults>
</compile_context>

<pallas_src>
import functools

import jax
import jax.numpy as jnp
import numpy as np
from jax.experimental import pallas as pl
from jax.experimental.pallas import tpu as pltpu


# --------------------------------------------------------------------------- #
# Pallas kernel
# --------------------------------------------------------------------------- #
def decoder_kernel(enc_ref, y_ref, slab_ref, scal_ref, out_ref, *, n_steps, T, E, D):
    B = enc_ref.shape[0]
    G = 4 * D
    TE = T * E
    AC = ((3 * T + 127) // 128) * 128      # lane-padded width of the attention block

    enc = enc_ref[...]                     # (B, T*E)  flat encoder states (f32)
    y2d = y_ref[...]                       # (B, T)

    # --- static row slices of the packed weight slab (free) ------------------ #
    r = 0
    bigw = slab_ref[r:r + 2 * D, :]                    # (2D, 4D+T*E) fused step weight
    r += 2 * D
    ud_blk = slab_ref[r:r + TE, 0:TE]                  # (T*E, T*E)  block-diag U_d
    r += TE
    attnw = slab_ref[r:r + TE, 0:AC]                   # (T*E, AC)   [v_d | w_c | hw_c]
    r += TE
    vecs = slab_ref[r:r + 8, :]                        # (8, 4D+T*E) packed small vectors
    wd_b_t = vecs[0:1, 0:TE]                           # W_d bias tiled over T
    wih = vecs[1:2, 0:G]                               # LSTM W_ih^T (input size 1)
    b_gate = vecs[2:3, 0:G]                            # b_ih + b_hh (folded)
    hwd = vecs[3:4, 0:D]                               # W_y_d @ v_y^T (head, d part)

    wty = scal_ref[0]                                  # w_tilda weight on y_t
    wtb = scal_ref[1]                                  # w_tilda bias
    head_b = scal_ref[2]                               # folded head bias

    # --- loop-invariant hoists (one-shot MXU work) ---------------------------- #
    y1b = jnp.dot(enc, ud_blk, preferred_element_type=jnp.float32) + wd_b_t   # (B, T*E)
    eall = jnp.dot(enc, attnw, preferred_element_type=jnp.float32)            # (B, AC)
    ewc = eall[:, T:2 * T]                  # sum_e enc[b,t,e] * w_tilda_c[e]
    ehw = eall[:, 2 * T:3 * T]              # sum_e enc[b,t,e] * (W_y_c v_y)[e]
    y_aff = y2d * wty + wtb                 # affine y-part of w_tilda, all timesteps

    # TODO(synk): on v6e/v7x the z1/tanh path can be cast to bf16 (keep f32 MXU
    # accumulation + f32 LSTM state); kept f32 so the 1e-4 check holds on all gens.

    ds = jnp.zeros((B, 2 * D), jnp.float32)     # [d ; s'] contiguous LSTM state
    e_exp = jnp.zeros((B, T), jnp.float32)      # last-step softmax numerator
    recip = jnp.zeros((B, 1), jnp.float32)      # last-step 1 / softmax denominator

    # Strictly serial recurrence; short static trip count -> Python unroll.
    # TODO(synk): for timestep > ~16 switch to lax.fori_loop carrying (ds, e_exp, recip)
    # to bound code size and vreg live ranges.
    for t in range(n_steps):
        # One fused MXU push per step: [d @ W_hh | tile_T([d;s] @ W_d^T)]
        z = jnp.dot(ds, bigw, preferred_element_type=jnp.float32)    # (B, 4D+T*E)
        dhh = z[:, :G]
        z1 = jnp.tanh(z[:, G:] + y1b)                                # (B, T*E) lane-dense

        # attention scores + softmax (max-subtracted); divide -> reciprocal multiply
        zl = jnp.dot(z1, attnw, preferred_element_type=jnp.float32)  # (B, AC)
        l = zl[:, :T]
        e_exp = jnp.exp(l - jnp.max(l, axis=1, keepdims=True))
        recip = pl.reciprocal(jnp.sum(e_exp, axis=1, keepdims=True))

        # y_tilda_t = w_tilda([c_t ; y_t]) without materializing c_t
        y_tilda = (jnp.sum(e_exp * ewc, axis=1, keepdims=True) * recip
                   + y_aff[:, t:t + 1])                              # (B, 1)

        # LSTMCell(y_tilda, (d, s')); K=1 input matmul is a VPU broadcast multiply.
        gates = y_tilda * wih + dhh + b_gate                         # (B, 4D)
        sig = jax.nn.sigmoid(gates)                                  # one wide EUP call
        th = jnp.tanh(gates)                                         # one wide EUP call
        i_g = sig[:, 0:D]
        f_g = sig[:, D:2 * D]
        g_g = th[:, 2 * D:3 * D]
        o_g = sig[:, 3 * D:4 * D]
        s_new = f_g * ds[:, D:] + i_g * g_g
        d_new = o_g * jnp.tanh(s_new)
        ds = jnp.concatenate([d_new, s_new], axis=-1)  # minor lane shuffle (low prio)

    # Folded head: v_y(W_y([d ; c])) = d.hwd + (c-part via last-step softmax) + head_b
    out_d = jnp.sum(ds[:, :D] * hwd, axis=-1, keepdims=True)
    out_c = jnp.sum(e_exp * ehw, axis=-1, keepdims=True) * recip
    out_ref[...] = out_d + out_c + head_b


# --------------------------------------------------------------------------- #
# One-time weight packing (hoisted out of the per-call hot path)
# --------------------------------------------------------------------------- #
def pack_params(p, T):
    D = p["whh"].shape[0]
    E = p["ud"].shape[0]
    G = 4 * D
    TE = T * E
    W = G + TE
    AC = ((3 * T + 127) // 128) * 128
    assert AC <= W
    f32 = jnp.float32
    eyeT = jnp.eye(T, dtype=f32)

    # Fused per-step weight: cols [0:4D] apply W_hh to the d-half of [d;s];
    # cols [4D:] apply W_d^T to [d;s], tiled T times along lanes (x1 broadcast).
    wd_T = jnp.concatenate([p["wd_d"], p["wd_s"]], axis=0)              # (2D, E)
    whh_pad = jnp.concatenate([p["whh"], jnp.zeros((D, G), f32)], 0)    # (2D, 4D)
    bigw = jnp.concatenate([whh_pad, jnp.tile(wd_T, (1, T))], axis=1)   # (2D, W)

    # Block-diagonal U_d so y1 stays in the flat (B, T*E) layout (no in-kernel reshape).
    ud_blk = jnp.kron(eyeT, p["ud"])                                    # (TE, TE)

    # Attention selector columns: block-diag of v_d, w_tilda_c and (W_y_c @ v_y^T).
    def blk(vec):
        return jnp.kron(eyeT, vec.reshape(E, 1))                        # (TE, T)

    hwc = (p["wyc"] @ p["vy"].T)[:, 0]                                  # (E,)
    attnw = jnp.concatenate([blk(p["vd"][0]), blk(p["wtc"][0]), blk(hwc)], axis=1)
    attnw = jnp.pad(attnw, ((0, 0), (0, AC - 3 * T)))                   # (TE, AC)

    # Folded output head.
    hwd = (p["wyd"] @ p["vy"].T)[:, 0]                                  # (D,)
    head_b = jnp.sum(p["wyb"] * p["vy"]) + p["vyb"][0, 0]

    vec_rows = jnp.zeros((8, W), f32)
    vec_rows = vec_rows.at[0, :TE].set(jnp.tile(p["wd_b"], (1, T))[0])
    vec_rows = vec_rows.at[1, :G].set(p["wih"][0])
    vec_rows = vec_rows.at[2, :G].set((p["bih"] + p["bhh"])[0])
    vec_rows = vec_rows.at[3, :D].set(hwd)

    def padW(x):
        return jnp.pad(x, ((0, 0), (0, W - x.shape[1])))

    slab = jnp.concatenate([padW(bigw), padW(ud_blk), padW(attnw), vec_rows],
                           axis=0).astype(f32)                          # (2D+2TE+8, W)
    scal = jnp.stack([p["wty"][0, 0], p["wtb"][0, 0], head_b]).astype(f32)
    return {"slab": slab, "scal": scal, "T": T, "E": E, "D": D}


# --------------------------------------------------------------------------- #
# Wrapper
# --------------------------------------------------------------------------- #
def temporal_attention_decoder(encoded_inputs, y, packed, timestep):
    """encoded_inputs: (B, T, E); y: (B, T, 1); packed = pack_params(...) -> (B, 1)."""
    B, T, E = encoded_inputs.shape
    assert T == packed["T"] and E == packed["E"]
    D = packed["D"]

    enc_flat = encoded_inputs.reshape(B, T * E).astype(jnp.float32)  # free XLA reshape
    y2d = y[:, :, 0].astype(jnp.float32)

    vmem = pl.BlockSpec(memory_space=pltpu.MemorySpace.VMEM)
    smem = pl.BlockSpec(memory_space=pltpu.MemorySpace.SMEM)
    kernel = functools.partial(decoder_kernel, n_steps=timestep - 1, T=T, E=E, D=D)

    # Empty grid: the whole problem (<1 MiB) is VMEM-resident on one TensorCore.
    # TODO(synk): for B in the hundreds on v7x, add grid=(2,) over a batch tile with
    # dimension_semantics=("parallel",) and slab index_maps returning block 0.
    return pl.pallas_call(
        kernel,
        out_shape=jax.ShapeDtypeStruct((B, 1), jnp.float32),
        in_specs=[vmem, vmem, vmem, smem],
        out_specs=vmem,
    )(enc_flat, y2d, packed["slab"], packed["scal"])


# --------------------------------------------------------------------------- #
# Deterministic parameter construction (matches PyTorch module shapes)
# --------------------------------------------------------------------------- #
def make_params(key, E, D):
    ks = jax.random.split(key, 12)
    u = lambda k, shape: (jax.random.uniform(k, shape, jnp.float32) - 0.5) * 0.2

    wd_w = u(ks[0], (E, 2 * D))          # nn.Linear(2D, E)
    wd_b = u(ks[1], (E,))
    ud_w = u(ks[2], (E, E))              # nn.Linear(E, E, bias=False)
    vd_w = u(ks[3], (1, E))              # nn.Linear(E, 1, bias=False)
    wt_w = u(ks[4], (1, E + 1))          # nn.Linear(E+1, 1)
    wt_b = u(ks[5], (1,))
    wih = u(ks[6], (4 * D, 1))           # nn.LSTMCell(1, D)
    whh = u(ks[7], (4 * D, D))
    bih = u(ks[8], (4 * D,))
    bhh = u(ks[9], (4 * D,))
    wy_w = u(ks[10], (D, D + E))         # nn.Linear(D+E, D)
    wy_b = u(ks[11], (D,))
    vy_w = u(jax.random.fold_in(key, 100), (1, D))    # nn.Linear(D, 1)
    vy_b = u(jax.random.fold_in(key, 101), (1,))

    return {
        "wd_d": wd_w[:, :D].T, "wd_s": wd_w[:, D:].T, "wd_b": wd_b[None, :],
        "ud": ud_w.T, "vd": vd_w,
        "wtc": wt_w[:, :E], "wty": wt_w[:, E:E + 1], "wtb": wt_b[None, :],
        "wih": wih.T, "whh": whh.T, "bih": bih[None, :], "bhh": bhh[None, :],
        "wyd": wy_w[:, :D].T, "wyc": wy_w[:, D:].T, "wyb": wy_b[None, :],
        "vy": vy_w, "vyb": vy_b[None, :],
    }


# Pure-JAX reference (mirrors the PyTorch forward exactly, unfused weights).
def reference(enc, y, p, timestep):
    B, T, E = enc.shape
    D = p["whh"].shape[0]
    d = jnp.zeros((B, D), jnp.float32)
    s = jnp.zeros((B, D), jnp.float32)
    c = jnp.zeros((B, E), jnp.float32)
    y1 = jnp.einsum("bte,ef->btf", enc, p["ud"])
    for t in range(timestep - 1):
        x1 = d @ p["wd_d"] + s @ p["wd_s"] + p["wd_b"]
        z1 = jnp.tanh(x1[:, None, :] + y1)
        l = jnp.sum(z1 * p["vd"][None, :, :], axis=-1)
        beta = jax.nn.softmax(l, axis=1)
        c = jnp.sum(beta[:, :, None] * enc, axis=1)
        y_t = y[:, t, :]
        y_tilda = (jnp.sum(c * p["wtc"], axis=-1, keepdims=True)
                   + y_t * p["wty"][0, 0] + p["wtb"][0, 0])
        gates = y_tilda @ p["wih"] + p["bih"] + d @ p["whh"] + p["bhh"]
        i_g = jax.nn.sigmoid(gates[:, :D])
        f_g = jax.nn.sigmoid(gates[:, D:2 * D])
        g_g = jnp.tanh(gates[:, 2 * D:3 * D])
        o_g = jax.nn.sigmoid(gates[:, 3 * D:4 * D])
        s = f_g * s + i_g * g_g
        d = o_g * jnp.tanh(s)
    h = d @ p["wyd"] + c @ p["wyc"] + p["wyb"]
    return jnp.sum(h * p["vy"], axis=-1, keepdims=True) + p["vyb"][0, 0]


if __name__ == "__main__":
    B, T, E, D = 8, 8, 32, 32          # batch, timestep, encoder_hidden, decoder_hidden
    timestep = T

    key = jax.random.PRNGKey(0)
    k_enc, k_y, k_p = jax.random.split(key, 3)
    encoded_inputs = jax.random.normal(k_enc, (B, T, E), jnp.float32)
    y = jax.random.normal(k_y, (B, T, 1), jnp.float32)
    params = make_params(k_p, E, D)

    packed = pack_params(params, T)    # one-time packing, outside the decode hot path

    out = temporal_attention_decoder(encoded_inputs, y, packed, timestep)
    out = jax.block_until_ready(out)

    ref = reference(encoded_inputs, y, params, timestep)
    np.testing.assert_allclose(np.asarray(out), np.asarray(ref), rtol=1e-4, atol=1e-4)

    print("KERNEL_OK")
</pallas_src>

<mosaic_0001>
module attributes {stable_mosaic.version = 11 : i64} {
  func.func @decoder_kernel(%arg0: memref<8x256xf32, #tpu.memory_space<vmem>>, %arg1: memref<8x8xf32, #tpu.memory_space<vmem>>, %arg2: memref<584x384xf32, #tpu.memory_space<vmem>>, %arg3: memref<3xf32, #tpu.memory_space<smem>>, %arg4: memref<8x1xf32, #tpu.memory_space<vmem>>) attributes {dimension_semantics = [], scalar_prefetch = 0 : i64, scratch_operands = 0 : i64, tpu.core_type = #tpu.core_type<tc>} {
    %c0 = arith.constant 0 : index
    %c0_0 = arith.constant 0 : index
    %0 = vector.load %arg0[%c0, %c0_0] : memref<8x256xf32, #tpu.memory_space<vmem>>, vector<8x256xf32>
    %c0_1 = arith.constant 0 : index
    %c0_2 = arith.constant 0 : index
    %1 = vector.load %arg1[%c0_1, %c0_2] : memref<8x8xf32, #tpu.memory_space<vmem>>, vector<8x8xf32>
    %c0_3 = arith.constant 0 : index
    %c0_4 = arith.constant 0 : index
    %2 = vector.load %arg2[%c0_3, %c0_4] : memref<584x384xf32, #tpu.memory_space<vmem>>, vector<64x384xf32>
    %c64 = arith.constant 64 : index
    %c0_5 = arith.constant 0 : index
    %3 = vector.load %arg2[%c64, %c0_5] : memref<584x384xf32, #tpu.memory_space<vmem>>, vector<256x256xf32>
    %c320 = arith.constant 320 : index
    %c0_6 = arith.constant 0 : index
    %4 = vector.load %arg2[%c320, %c0_6] : memref<584x384xf32, #tpu.memory_space<vmem>>, vector<256x128xf32>
    %c576 = arith.constant 576 : index
    %c0_7 = arith.constant 0 : index
    %5 = vector.load %arg2[%c576, %c0_7] : memref<584x384xf32, #tpu.memory_space<vmem>>, vector<8x384xf32>
    %6 = vector.extract_strided_slice %5 {offsets = [0, 0], sizes = [1, 256], strides = [1, 1]} : vector<8x384xf32> to vector<1x256xf32>
    %7 = vector.extract_strided_slice %5 {offsets = [1, 0], sizes = [1, 128], strides = [1, 1]} : vector<8x384xf32> to vector<1x128xf32>
    %8 = vector.extract_strided_slice %5 {offsets = [2, 0], sizes = [1, 128], strides = [1, 1]} : vector<8x384xf32> to vector<1x128xf32>
    %9 = vector.extract_strided_slice %5 {offsets = [3, 0], sizes = [1, 32], strides = [1, 1]} : vector<8x384xf32> to vector<1x32xf32>
    %c0_8 = arith.constant 0 : index
    %10 = memref.load %arg3[%c0_8] : memref<3xf32, #tpu.memory_space<smem>>
    %c1 = arith.constant 1 : index
    %11 = memref.load %arg3[%c1] : memref<3xf32, #tpu.memory_space<smem>>
    %c2 = arith.constant 2 : index
    %12 = memref.load %arg3[%c2] : memref<3xf32, #tpu.memory_space<smem>>
    %cst = arith.constant dense<0.000000e+00> : vector<8x256xf32>
    %13 = tpu.matmul %0, %3, %cst {dimension_numbers = #tpu.dot_dimension_numbers<[1], [0], [0], [1], [0, 0, 1, 1], [], []>} : vector<8x256xf32>, vector<256x256xf32>, vector<8x256xf32> -> vector<8x256xf32>
    %14 = vector.broadcast %6 : vector<1x256xf32> to vector<8x256xf32>
    %15 = arith.addf %13, %14 : vector<8x256xf32>
    %cst_9 = arith.constant dense<0.000000e+00> : vector<8x128xf32>
    %16 = tpu.matmul %0, %4, %cst_9 {dimension_numbers = #tpu.dot_dimension_numbers<[1], [0], [0], [1], [0, 0, 1, 1], [], []>} : vector<8x256xf32>, vector<256x128xf32>, vector<8x128xf32> -> vector<8x128xf32>
    %17 = vector.extract_strided_slice %16 {offsets = [0, 8], sizes = [8, 8], strides = [1, 1]} : vector<8x128xf32> to vector<8x8xf32>
    %18 = vector.extract_strided_slice %16 {offsets = [0, 16], sizes = [8, 8], strides = [1, 1]} : vector<8x128xf32> to vector<8x8xf32>
    %19 = vector.broadcast %10 : f32 to vector<8x8xf32>
    %20 = arith.mulf %1, %19 : vector<8x8xf32>
    %21 = vector.broadcast %11 : f32 to vector<8x8xf32>
    %22 = arith.addf %20, %21 : vector<8x8xf32>
    %cst_10 = arith.constant 0.000000e+00 : f32
    %23 = vector.broadcast %cst_10 : f32 to vector<8x64xf32>
    %cst_11 = arith.constant dense<0.000000e+00> : vector<8x384xf32>
    %24 = tpu.matmul %23, %2, %cst_11 {dimension_numbers = #tpu.dot_dimension_numbers<[1], [0], [0], [1], [0, 0, 1, 1], [], []>} : vector<8x64xf32>, vector<64x384xf32>, vector<8x384xf32> -> vector<8x384xf32>
    %25 = vector.extract_strided_slice %24 {offsets = [0, 0], sizes = [8, 128], strides = [1, 1]} : vector<8x384xf32> to vector<8x128xf32>
    %26 = vector.extract_strided_slice %24 {offsets = [0, 128], sizes = [8, 256], strides = [1, 1]} : vector<8x384xf32> to vector<8x256xf32>
    %27 = arith.addf %26, %15 : vector<8x256xf32>
    %28 = math.tanh %27 : vector<8x256xf32>
    %cst_12 = arith.constant dense<0.000000e+00> : vector<8x128xf32>
    %29 = tpu.matmul %28, %4, %cst_12 {dimension_numbers = #tpu.dot_dimension_numbers<[1], [0], [0], [1], [0, 0, 1, 1], [], []>} : vector<8x256xf32>, vector<256x128xf32>, vector<8x128xf32> -> vector<8x128xf32>
    %30 = vector.extract_strided_slice %29 {offsets = [0, 0], sizes = [8, 8], strides = [1, 1]} : vector<8x128xf32> to vector<8x8xf32>
    %cst_13 = arith.constant dense<0xFF800000> : vector<8xf32>
    %31 = vector.multi_reduction <maximumf>, %30, %cst_13 [1] : vector<8x8xf32> to vector<8xf32>
    %32 = vector.shape_cast %31 : vector<8xf32> to vector<8x1xf32>
    %33 = vector.broadcast %32 : vector<8x1xf32> to vector<8x8xf32>
    %34 = arith.subf %30, %33 : vector<8x8xf32>
    %35 = math.exp %34 : vector<8x8xf32>
    %cst_14 = arith.constant dense<0.000000e+00> : vector<8xf32>
    %36 = vector.multi_reduction <add>, %35, %cst_14 [1] : vector<8x8xf32> to vector<8xf32>
    %37 = vector.shape_cast %36 : vector<8xf32> to vector<8x1xf32>
    %38 = tpu.reciprocal %37 : vector<8x1xf32> -> vector<8x1xf32>
    %39 = arith.mulf %35, %17 : vector<8x8xf32>
    %cst_15 = arith.constant dense<0.000000e+00> : vector<8xf32>
    %40 = vector.multi_reduction <add>, %39, %cst_15 [1] : vector<8x8xf32> to vector<8xf32>
    %41 = vector.shape_cast %40 : vector<8xf32> to vector<8x1xf32>
    %42 = arith.mulf %41, %38 : vector<8x1xf32>
    %43 = vector.extract_strided_slice %22 {offsets = [0, 0], sizes = [8, 1], strides = [1, 1]} : vector<8x8xf32> to vector<8x1xf32>
    %44 = arith.addf %42, %43 : vector<8x1xf32>
    %45 = vector.broadcast %44 : vector<8x1xf32> to vector<8x128xf32>
    %46 = vector.broadcast %7 : vector<1x128xf32> to vector<8x128xf32>
    %47 = arith.mulf %45, %46 : vector<8x128xf32>
    %48 = arith.addf %47, %25 : vector<8x128xf32>
    %49 = vector.broadcast %8 : vector<1x128xf32> to vector<8x128xf32>
    %50 = arith.addf %48, %49 : vector<8x128xf32>
    %51 = arith.negf %50 : vector<8x128xf32>
    %52 = math.exp %51 : vector<8x128xf32>
    %cst_16 = arith.constant 1.000000e+00 : f32
    %53 = vector.broadcast %cst_16 : f32 to vector<8x128xf32>
    %54 = arith.addf %53, %52 : vector<8x128xf32>
    %55 = arith.divf %53, %54 : vector<8x128xf32>
    %56 = math.tanh %50 : vector<8x128xf32>
    %57 = vector.extract_strided_slice %55 {offsets = [0, 0], sizes = [8, 32], strides = [1, 1]} : vector<8x128xf32> to vector<8x32xf32>
    %58 = vector.extract_strided_slice %55 {offsets = [0, 32], sizes = [8, 32], strides = [1, 1]} : vector<8x128xf32> to vector<8x32xf32>
    %59 = vector.extract_strided_slice %56 {offsets = [0, 64], sizes = [8, 32], strides = [1, 1]} : vector<8x128xf32> to vector<8x32xf32>
    %60 = vector.extract_strided_slice %55 {offsets = [0, 96], sizes = [8, 32], strides = [1, 1]} : vector<8x128xf32> to vector<8x32xf32>
    %61 = vector.extract_strided_slice %23 {offsets = [0, 32], sizes = [8, 32], strides = [1, 1]} : vector<8x64xf32> to vector<8x32xf32>
    %62 = arith.mulf %58, %61 : vector<8x32xf32>
    %63 = arith.mulf %57, %59 : vector<8x32xf32>
    %64 = arith.addf %62, %63 : vector<8x32xf32>
    %65 = math.tanh %64 : vector<8x32xf32>
    %66 = arith.mulf %60, %65 : vector<8x32xf32>
    %67 = tpu.concatenate %66, %64 in 1 : vector<8x32xf32>, vector<8x32xf32> -> vector<8x64xf32>
    %cst_17 = arith.constant dense<0.000000e+00> : vector<8x384xf32>
    %68 = tpu.matmul %67, %2, %cst_17 {dimension_numbers = #tpu.dot_dimension_numbers<[1], [0], [0], [1], [0, 0, 1, 1], [], []>} : vector<8x64xf32>, vector<64x384xf32>, vector<8x384xf32> -> vector<8x384xf32>
    %69 = vector.extract_strided_slice %68 {offsets = [0, 0], sizes = [8, 128], strides = [1, 1]} : vector<8x384xf32> to vector<8x128xf32>
    %70 = vector.extract_strided_slice %68 {offsets = [0, 128], sizes = [8, 256], strides = [1, 1]} : vector<8x384xf32> to vector<8x256xf32>
    %71 = arith.addf %70, %15 : vector<8x256xf32>
    %72 = math.tanh %71 : vector<8x256xf32>
    %cst_18 = arith.constant dense<0.000000e+00> : vector<8x128xf32>
    %73 = tpu.matmul %72, %4, %cst_18 {dimension_numbers = #tpu.dot_dimension_numbers<[1], [0], [0], [1], [0, 0, 1, 1], [], []>} : vector<8x256xf32>, vector<256x128xf32>, vector<8x128xf32> -> vector<8x128xf32>
    %74 = vector.extract_strided_slice %73 {offsets = [0, 0], sizes = [8, 8], strides = [1, 1]} : vector<8x128xf32> to vector<8x8xf32>
    %cst_19 = arith.constant dense<0xFF800000> : vector<8xf32>
    %75 = vector.multi_reduction <maximumf>, %74, %cst_19 [1] : vector<8x8xf32> to vector<8xf32>
    %76 = vector.shape_cast %75 : vector<8xf32> to vector<8x1xf32>
    %77 = vector.broadcast %76 : vector<8x1xf32> to vector<8x8xf32>
    %78 = arith.subf %74, %77 : vector<8x8xf32>
    %79 = math.exp %78 : vector<8x8xf32>
    %cst_20 = arith.constant dense<0.000000e+00> : vector<8xf32>
    %80 = vector.multi_reduction <add>, %79, %cst_20 [1] : vector<8x8xf32> to vector<8xf32>
    %81 = vector.shape_cast %80 : vector<8xf32> to vector<8x1xf32>
    %82 = tpu.reciprocal %81 : vector<8x1xf32> -> vector<8x1xf32>
    %83 = arith.mulf %79, %17 : vector<8x8xf32>
    %cst_21 = arith.constant dense<0.000000e+00> : vector<8xf32>
    %84 = vector.multi_reduction <add>, %83, %cst_21 [1] : vector<8x8xf32> to vector<8xf32>
    %85 = vector.shape_cast %84 : vector<8xf32> to vector<8x1xf32>
    %86 = arith.mulf %85, %82 : vector<8x1xf32>
    %87 = vector.extract_strided_slice %22 {offsets = [0, 1], sizes = [8, 1], strides = [1, 1]} : vector<8x8xf32> to vector<8x1xf32>
    %88 = arith.addf %86, %87 : vector<8x1xf32>
    %89 = vector.broadcast %88 : vector<8x1xf32> to vector<8x128xf32>
    %90 = vector.broadcast %7 : vector<1x128xf32> to vector<8x128xf32>
    %91 = arith.mulf %89, %90 : vector<8x128xf32>
    %92 = arith.addf %91, %69 : vector<8x128xf32>
    %93 = vector.broadcast %8 : vector<1x128xf32> to vector<8x128xf32>
    %94 = arith.addf %92, %93 : vector<8x128xf32>
    %95 = arith.negf %94 : vector<8x128xf32>
    %96 = math.exp %95 : vector<8x128xf32>
    %cst_22 = arith.constant 1.000000e+00 : f32
    %97 = vector.broadcast %cst_22 : f32 to vector<8x128xf32>
    %98 = arith.addf %97, %96 : vector<8x128xf32>
    %99 = arith.divf %97, %98 : vector<8x128xf32>
    %100 = math.tanh %94 : vector<8x128xf32>
    %101 = vector.extract_strided_slice %99 {offsets = [0, 0], sizes = [8, 32], strides = [1, 1]} : vector<8x128xf32> to vector<8x32xf32>
    %102 = vector.extract_strided_slice %99 {offsets = [0, 32], sizes = [8, 32], strides = [1, 1]} : vector<8x128xf32> to vector<8x32xf32>
    %103 = vector.extract_strided_slice %100 {offsets = [0, 64], sizes = [8, 32], strides = [1, 1]} : vector<8x128xf32> to vector<8x32xf32>
    %104 = vector.extract_strided_slice %99 {offsets = [0, 96], sizes = [8, 32], strides = [1, 1]} : vector<8x128xf32> to vector<8x32xf32>
    %105 = vector.extract_strided_slice %67 {offsets = [0, 32], sizes = [8, 32], strides = [1, 1]} : vector<8x64xf32> to vector<8x32xf32>
    %106 = arith.mulf %102, %105 : vector<8x32xf32>
    %107 = arith.mulf %101, %103 : vector<8x32xf32>
    %108 = arith.addf %106, %107 : vector<8x32xf32>
    %109 = math.tanh %108 : vector<8x32xf32>
    %110 = arith.mulf %104, %109 : vector<8x32xf32>
    %111 = tpu.concatenate %110, %108 in 1 : vector<8x32xf32>, vector<8x32xf32> -> vector<8x64xf32>
    %cst_23 = arith.constant dense<0.000000e+00> : vector<8x384xf32>
    %112 = tpu.matmul %111, %2, %cst_23 {dimension_numbers = #tpu.dot_dimension_numbers<[1], [0], [0], [1], [0, 0, 1, 1], [], []>} : vector<8x64xf32>, vector<64x384xf32>, vector<8x384xf32> -> vector<8x384xf32>
    %113 = vector.extract_strided_slice %112 {offsets = [0, 0], sizes = [8, 128], strides = [1, 1]} : vector<8x384xf32> to vector<8x128xf32>
    %114 = vector.extract_strided_slice %112 {offsets = [0, 128], sizes = [8, 256], strides = [1, 1]} : vector<8x384xf32> to vector<8x256xf32>
    %115 = arith.addf %114, %15 : vector<8x256xf32>
    %116 = math.tanh %115 : vector<8x256xf32>
    %cst_24 = arith.constant dense<0.000000e+00> : vector<8x128xf32>
    %117 = tpu.matmul %116, %4, %cst_24 {dimension_numbers = #tpu.dot_dimension_numbers<[1], [0], [0], [1], [0, 0, 1, 1], [], []>} : vector<8x256xf32>, vector<256x128xf32>, vector<8x128xf32> -> vector<8x128xf32>
    %118 = vector.extract_strided_slice %117 {offsets = [0, 0], sizes = [8, 8], strides = [1, 1]} : vector<8x128xf32> to vector<8x8xf32>
    %cst_25 = arith.constant dense<0xFF800000> : vector<8xf32>
    %119 = vector.multi_reduction <maximumf>, %118, %cst_25 [1] : vector<8x8xf32> to vector<8xf32>
    %120 = vector.shape_cast %119 : vector<8xf32> to vector<8x1xf32>
    %121 = vector.broadcast %120 : vector<8x1xf32> to vector<8x8xf32>
    %122 = arith.subf %118, %121 : vector<8x8xf32>
    %123 = math.exp %122 : vector<8x8xf32>
    %cst_26 = arith.constant dense<0.000000e+00> : vector<8xf32>
    %124 = vector.multi_reduction <add>, %123, %cst_26 [1] : vector<8x8xf32> to vector<8xf32>
    %125 = vector.shape_cast %124 : vector<8xf32> to vector<8x1xf32>
    %126 = tpu.reciprocal %125 : vector<8x1xf32> -> vector<8x1xf32>
    %127 = arith.mulf %123, %17 : vector<8x8xf32>
    %cst_27 = arith.constant dense<0.000000e+00> : vector<8xf32>
    %128 = vector.multi_reduction <add>, %127, %cst_27 [1] : vector<8x8xf32> to vector<8xf32>
    %129 = vector.shape_cast %128 : vector<8xf32> to vector<8x1xf32>
    %130 = arith.mulf %129, %126 : vector<8x1xf32>
    %131 = vector.extract_strided_slice %22 {offsets = [0, 2], sizes = [8, 1], strides = [1, 1]} : vector<8x8xf32> to vector<8x1xf32>
    %132 = arith.addf %130, %131 : vector<8x1xf32>
    %133 = vector.broadcast %132 : vector<8x1xf32> to vector<8x128xf32>
    %134 = vector.broadcast %7 : vector<1x128xf32> to vector<8x128xf32>
    %135 = arith.mulf %133, %134 : vector<8x128xf32>
    %136 = arith.addf %135, %113 : vector<8x128xf32>
    %137 = vector.broadcast %8 : vector<1x128xf32> to vector<8x128xf32>
    %138 = arith.addf %136, %137 : vector<8x128xf32>
    %139 = arith.negf %138 : vector<8x128xf32>
    %140 = math.exp %139 : vector<8x128xf32>
    %cst_28 = arith.constant 1.000000e+00 : f32
    %141 = vector.broadcast %cst_28 : f32 to vector<8x128xf32>
    %142 = arith.addf %141, %140 : vector<8x128xf32>
    %143 = arith.divf %141, %142 : vector<8x128xf32>
    %144 = math.tanh %138 : vector<8x128xf32>
    %145 = vector.extract_strided_slice %143 {offsets = [0, 0], sizes = [8, 32], strides = [1, 1]} : vector<8x128xf32> to vector<8x32xf32>
    %146 = vector.extract_strided_slice %143 {offsets = [0, 32], sizes = [8, 32], strides = [1, 1]} : vector<8x128xf32> to vector<8x32xf32>
    %147 = vector.extract_strided_slice %144 {offsets = [0, 64], sizes = [8, 32], strides = [1, 1]} : vector<8x128xf32> to vector<8x32xf32>
    %148 = vector.extract_strided_slice %143 {offsets = [0, 96], sizes = [8, 32], strides = [1, 1]} : vector<8x128xf32> to vector<8x32xf32>
    %149 = vector.extract_strided_slice %111 {offsets = [0, 32], sizes = [8, 32], strides = [1, 1]} : vector<8x64xf32> to vector<8x32xf32>
    %150 = arith.mulf %146, %149 : vector<8x32xf32>
    %151 = arith.mulf %145, %147 : vector<8x32xf32>
    %152 = arith.addf %150, %151 : vector<8x32xf32>
    %153 = math.tanh %152 : vector<8x32xf32>
    %154 = arith.mulf %148, %153 : vector<8x32xf32>
    %155 = tpu.concatenate %154, %152 in 1 : vector<8x32xf32>, vector<8x32xf32> -> vector<8x64xf32>
    %cst_29 = arith.constant dense<0.000000e+00> : vector<8x384xf32>
    %156 = tpu.matmul %155, %2, %cst_29 {dimension_numbers = #tpu.dot_dimension_numbers<[1], [0], [0], [1], [0, 0, 1, 1], [], []>} : vector<8x64xf32>, vector<64x384xf32>, vector<8x384xf32> -> vector<8x384xf32>
    %157 = vector.extract_strided_slice %156 {offsets = [0, 0], sizes = [8, 128], strides = [1, 1]} : vector<8x384xf32> to vector<8x128xf32>
    %158 = vector.extract_strided_slice %156 {offsets = [0, 128], sizes = [8, 256], strides = [1, 1]} : vector<8x384xf32> to vector<8x256xf32>
    %159 = arith.addf %158, %15 : vector<8x256xf32>
    %160 = math.tanh %159 : vector<8x256xf32>
    %cst_30 = arith.constant dense<0.000000e+00> : vector<8x128xf32>
    %161 = tpu.matmul %160, %4, %cst_30 {dimension_numbers = #tpu.dot_dimension_numbers<[1], [0], [0], [1], [0, 0, 1, 1], [], []>} : vector<8x256xf32>, vector<256x128xf32>, vector<8x128xf32> -> vector<8x128xf32>
    %162 = vector.extract_strided_slice %161 {offsets = [0, 0], sizes = [8, 8], strides = [1, 1]} : vector<8x128xf32> to vector<8x8xf32>
    %cst_31 = arith.constant dense<0xFF800000> : vector<8xf32>
    %163 = vector.multi_reduction <maximumf>, %162, %cst_31 [1] : vector<8x8xf32> to vector<8xf32>
    %164 = vector.shape_cast %163 : vector<8xf32> to vector<8x1xf32>
    %165 = vector.broadcast %164 : vector<8x1xf32> to vector<8x8xf32>
    %166 = arith.subf %162, %165 : vector<8x8xf32>
    %167 = math.exp %166 : vector<8x8xf32>
    %cst_32 = arith.constant dense<0.000000e+00> : vector<8xf32>
    %168 = vector.multi_reduction <add>, %167, %cst_32 [1] : vector<8x8xf32> to vector<8xf32>
    %169 = vector.shape_cast %168 : vector<8xf32> to vector<8x1xf32>
    %170 = tpu.reciprocal %169 : vector<8x1xf32> -> vector<8x1xf32>
    %171 = arith.mulf %167, %17 : vector<8x8xf32>
    %cst_33 = arith.constant dense<0.000000e+00> : vector<8xf32>
    %172 = vector.multi_reduction <add>, %171, %cst_33 [1] : vector<8x8xf32> to vector<8xf32>
    %173 = vector.shape_cast %172 : vector<8xf32> to vector<8x1xf32>
    %174 = arith.mulf %173, %170 : vector<8x1xf32>
    %175 = vector.extract_strided_slice %22 {offsets = [0, 3], sizes = [8, 1], strides = [1, 1]} : vector<8x8xf32> to vector<8x1xf32>
    %176 = arith.addf %174, %175 : vector<8x1xf32>
    %177 = vector.broadcast %176 : vector<8x1xf32> to vector<8x128xf32>
    %178 = vector.broadcast %7 : vector<1x128xf32> to vector<8x128xf32>
    %179 = arith.mulf %177, %178 : vector<8x128xf32>
    %180 = arith.addf %179, %157 : vector<8x128xf32>
    %181 = vector.broadcast %8 : vector<1x128xf32> to vector<8x128xf32>
    %182 = arith.addf %180, %181 : vector<8x128xf32>
    %183 = arith.negf %182 : vector<8x128xf32>
    %184 = math.exp %183 : vector<8x128xf32>
    %cst_34 = arith.constant 1.000000e+00 : f32
    %185 = vector.broadcast %cst_34 : f32 to vector<8x128xf32>
    %186 = arith.addf %185, %184 : vector<8x128xf32>
    %187 = arith.divf %185, %186 : vector<8x128xf32>
    %188 = math.tanh %182 : vector<8x128xf32>
    %189 = vector.extract_strided_slice %187 {offsets = [0, 0], sizes = [8, 32], strides = [1, 1]} : vector<8x128xf32> to vector<8x32xf32>
    %190 = vector.extract_strided_slice %187 {offsets = [0, 32], sizes = [8, 32], strides = [1, 1]} : vector<8x128xf32> to vector<8x32xf32>
    %191 = vector.extract_strided_slice %188 {offsets = [0, 64], sizes = [8, 32], strides = [1, 1]} : vector<8x128xf32> to vector<8x32xf32>
    %192 = vector.extract_strided_slice %187 {offsets = [0, 96], sizes = [8, 32], strides = [1, 1]} : vector<8x128xf32> to vector<8x32xf32>
    %193 = vector.extract_strided_slice %155 {offsets = [0, 32], sizes = [8, 32], strides = [1, 1]} : vector<8x64xf32> to vector<8x32xf32>
    %194 = arith.mulf %190, %193 : vector<8x32xf32>
    %195 = arith.mulf %189, %191 : vector<8x32xf32>
    %196 = arith.addf %194, %195 : vector<8x32xf32>
    %197 = math.tanh %196 : vector<8x32xf32>
    %198 = arith.mulf %192, %197 : vector<8x32xf32>
    %199 = tpu.concatenate %198, %196 in 1 : vector<8x32xf32>, vector<8x32xf32> -> vector<8x64xf32>
    %cst_35 = arith.constant dense<0.000000e+00> : vector<8x384xf32>
    %200 = tpu.matmul %199, %2, %cst_35 {dimension_numbers = #tpu.dot_dimension_numbers<[1], [0], [0], [1], [0, 0, 1, 1], [], []>} : vector<8x64xf32>, vector<64x384xf32>, vector<8x384xf32> -> vector<8x384xf32>
    %201 = vector.extract_strided_slice %200 {offsets = [0, 0], sizes = [8, 128], strides = [1, 1]} : vector<8x384xf32> to vector<8x128xf32>
    %202 = vector.extract_strided_slice %200 {offsets = [0, 128], sizes = [8, 256], strides = [1, 1]} : vector<8x384xf32> to vector<8x256xf32>
    %203 = arith.addf %202, %15 : vector<8x256xf32>
    %204 = math.tanh %203 : vector<8x256xf32>
    %cst_36 = arith.constant dense<0.000000e+00> : vector<8x128xf32>
    %205 = tpu.matmul %204, %4, %cst_36 {dimension_numbers = #tpu.dot_dimension_numbers<[1], [0], [0], [1], [0, 0, 1, 1], [], []>} : vector<8x256xf32>, vector<256x128xf32>, vector<8x128xf32> -> vector<8x128xf32>
    %206 = vector.extract_strided_slice %205 {offsets = [0, 0], sizes = [8, 8], strides = [1, 1]} : vector<8x128xf32> to vector<8x8xf32>
    %cst_37 = arith.constant dense<0xFF800000> : vector<8xf32>
    %207 = vector.multi_reduction <maximumf>, %206, %cst_37 [1] : vector<8x8xf32> to vector<8xf32>
    %208 = vector.shape_cast %207 : vector<8xf32> to vector<8x1xf32>
    %209 = vector.broadcast %208 : vector<8x1xf32> to vector<8x8xf32>
    %210 = arith.subf %206, %209 : vector<8x8xf32>
    %211 = math.exp %210 : vector<8x8xf32>
    %cst_38 = arith.constant dense<0.000000e+00> : vector<8xf32>
    %212 = vector.multi_reduction <add>, %211, %cst_38 [1] : vector<8x8xf32> to vector<8xf32>
    %213 = vector.shape_cast %212 : vector<8xf32> to vector<8x1xf32>
    %214 = tpu.reciprocal %213 : vector<8x1xf32> -> vector<8x1xf32>
    %215 = arith.mulf %211, %17 : vector<8x8xf32>
    %cst_39 = arith.constant dense<0.000000e+00> : vector<8xf32>
    %216 = vector.multi_reduction <add>, %215, %cst_39 [1] : vector<8x8xf32> to vector<8xf32>
    %217 = vector.shape_cast %216 : vector<8xf32> to vector<8x1xf32>
    %218 = arith.mulf %217, %214 : vector<8x1xf32>
    %219 = vector.extract_strided_slice %22 {offsets = [0, 4], sizes = [8, 1], strides = [1, 1]} : vector<8x8xf32> to vector<8x1xf32>
    %220 = arith.addf %218, %219 : vector<8x1xf32>
    %221 = vector.broadcast %220 : vector<8x1xf32> to vector<8x128xf32>
    %222 = vector.broadcast %7 : vector<1x128xf32> to vector<8x128xf32>
    %223 = arith.mulf %221, %222 : vector<8x128xf32>
    %224 = arith.addf %223, %201 : vector<8x128xf32>
    %225 = vector.broadcast %8 : vector<1x128xf32> to vector<8x128xf32>
    %226 = arith.addf %224, %225 : vector<8x128xf32>
    %227 = arith.negf %226 : vector<8x128xf32>
    %228 = math.exp %227 : vector<8x128xf32>
    %cst_40 = arith.constant 1.000000e+00 : f32
    %229 = vector.broadcast %cst_40 : f32 to vector<8x128xf32>
    %230 = arith.addf %229, %228 : vector<8x128xf32>
    %231 = arith.divf %229, %230 : vector<8x128xf32>
    %232 = math.tanh %226 : vector<8x128xf32>
    %233 = vector.extract_strided_slice %231 {offsets = [0, 0], sizes = [8, 32], strides = [1, 1]} : vector<8x128xf32> to vector<8x32xf32>
    %234 = vector.extract_strided_slice %231 {offsets = [0, 32], sizes = [8, 32], strides = [1, 1]} : vector<8x128xf32> to vector<8x32xf32>
    %235 = vector.extract_strided_slice %232 {offsets = [0, 64], sizes = [8, 32], strides = [1, 1]} : vector<8x128xf32> to vector<8x32xf32>
    %236 = vector.extract_strided_slice %231 {offsets = [0, 96], sizes = [8, 32], strides = [1, 1]} : vector<8x128xf32> to vector<8x32xf32>
    %237 = vector.extract_strided_slice %199 {offsets = [0, 32], sizes = [8, 32], strides = [1, 1]} : vector<8x64xf32> to vector<8x32xf32>
    %238 = arith.mulf %234, %237 : vector<8x32xf32>
    %239 = arith.mulf %233, %235 : vector<8x32xf32>
    %240 = arith.addf %238, %239 : vector<8x32xf32>
    %241 = math.tanh %240 : vector<8x32xf32>
    %242 = arith.mulf %236, %241 : vector<8x32xf32>
    %243 = tpu.concatenate %242, %240 in 1 : vector<8x32xf32>, vector<8x32xf32> -> vector<8x64xf32>
    %cst_41 = arith.constant dense<0.000000e+00> : vector<8x384xf32>
    %244 = tpu.matmul %243, %2, %cst_41 {dimension_numbers = #tpu.dot_dimension_numbers<[1], [0], [0], [1], [0, 0, 1, 1], [], []>} : vector<8x64xf32>, vector<64x384xf32>, vector<8x384xf32> -> vector<8x384xf32>
    %245 = vector.extract_strided_slice %244 {offsets = [0, 0], sizes = [8, 128], strides = [1, 1]} : vector<8x384xf32> to vector<8x128xf32>
    %246 = vector.extract_strided_slice %244 {offsets = [0, 128], sizes = [8, 256], strides = [1, 1]} : vector<8x384xf32> to vector<8x256xf32>
    %247 = arith.addf %246, %15 : vector<8x256xf32>
    %248 = math.tanh %247 : vector<8x256xf32>
    %cst_42 = arith.constant dense<0.000000e+00> : vector<8x128xf32>
    %249 = tpu.matmul %248, %4, %cst_42 {dimension_numbers = #tpu.dot_dimension_numbers<[1], [0], [0], [1], [0, 0, 1, 1], [], []>} : vector<8x256xf32>, vector<256x128xf32>, vector<8x128xf32> -> vector<8x128xf32>
    %250 = vector.extract_strided_slice %249 {offsets = [0, 0], sizes = [8, 8], strides = [1, 1]} : vector<8x128xf32> to vector<8x8xf32>
    %cst_43 = arith.constant dense<0xFF800000> : vector<8xf32>
    %251 = vector.multi_reduction <maximumf>, %250, %cst_43 [1] : vector<8x8xf32> to vector<8xf32>
    %252 = vector.shape_cast %251 : vector<8xf32> to vector<8x1xf32>
    %253 = vector.broadcast %252 : vector<8x1xf32> to vector<8x8xf32>
    %254 = arith.subf %250, %253 : vector<8x8xf32>
    %255 = math.exp %254 : vector<8x8xf32>
    %cst_44 = arith.constant dense<0.000000e+00> : vector<8xf32>
    %256 = vector.multi_reduction <add>, %255, %cst_44 [1] : vector<8x8xf32> to vector<8xf32>
    %257 = vector.shape_cast %256 : vector<8xf32> to vector<8x1xf32>
    %258 = tpu.reciprocal %257 : vector<8x1xf32> -> vector<8x1xf32>
    %259 = arith.mulf %255, %17 : vector<8x8xf32>
    %cst_45 = arith.constant dense<0.000000e+00> : vector<8xf32>
    %260 = vector.multi_reduction <add>, %259, %cst_45 [1] : vector<8x8xf32> to vector<8xf32>
    %261 = vector.shape_cast %260 : vector<8xf32> to vector<8x1xf32>
    %262 = arith.mulf %261, %258 : vector<8x1xf32>
    %263 = vector.extract_strided_slice %22 {offsets = [0, 5], sizes = [8, 1], strides = [1, 1]} : vector<8x8xf32> to vector<8x1xf32>
    %264 = arith.addf %262, %263 : vector<8x1xf32>
    %265 = vector.broadcast %264 : vector<8x1xf32> to vector<8x128xf32>
    %266 = vector.broadcast %7 : vector<1x128xf32> to vector<8x128xf32>
    %267 = arith.mulf %265, %266 : vector<8x128xf32>
    %268 = arith.addf %267, %245 : vector<8x128xf32>
    %269 = vector.broadcast %8 : vector<1x128xf32> to vector<8x128xf32>
    %270 = arith.addf %268, %269 : vector<8x128xf32>
    %271 = arith.negf %270 : vector<8x128xf32>
    %272 = math.exp %271 : vector<8x128xf32>
    %cst_46 = arith.constant 1.000000e+00 : f32
    %273 = vector.broadcast %cst_46 : f32 to vector<8x128xf32>
    %274 = arith.addf %273, %272 : vector<8x128xf32>
    %275 = arith.divf %273, %274 : vector<8x128xf32>
    %276 = math.tanh %270 : vector<8x128xf32>
    %277 = vector.extract_strided_slice %275 {offsets = [0, 0], sizes = [8, 32], strides = [1, 1]} : vector<8x128xf32> to vector<8x32xf32>
    %278 = vector.extract_strided_slice %275 {offsets = [0, 32], sizes = [8, 32], strides = [1, 1]} : vector<8x128xf32> to vector<8x32xf32>
    %279 = vector.extract_strided_slice %276 {offsets = [0, 64], sizes = [8, 32], strides = [1, 1]} : vector<8x128xf32> to vector<8x32xf32>
    %280 = vector.extract_strided_slice %275 {offsets = [0, 96], sizes = [8, 32], strides = [1, 1]} : vector<8x128xf32> to vector<8x32xf32>
    %281 = vector.extract_strided_slice %243 {offsets = [0, 32], sizes = [8, 32], strides = [1, 1]} : vector<8x64xf32> to vector<8x32xf32>
    %282 = arith.mulf %278, %281 : vector<8x32xf32>
    %283 = arith.mulf %277, %279 : vector<8x32xf32>
    %284 = arith.addf %282, %283 : vector<8x32xf32>
    %285 = math.tanh %284 : vector<8x32xf32>
    %286 = arith.mulf %280, %285 : vector<8x32xf32>
    %287 = tpu.concatenate %286, %284 in 1 : vector<8x32xf32>, vector<8x32xf32> -> vector<8x64xf32>
    %cst_47 = arith.constant dense<0.000000e+00> : vector<8x384xf32>
    %288 = tpu.matmul %287, %2, %cst_47 {dimension_numbers = #tpu.dot_dimension_numbers<[1], [0], [0], [1], [0, 0, 1, 1], [], []>} : vector<8x64xf32>, vector<64x384xf32>, vector<8x384xf32> -> vector<8x384xf32>
    %289 = vector.extract_strided_slice %288 {offsets = [0, 0], sizes = [8, 128], strides = [1, 1]} : vector<8x384xf32> to vector<8x128xf32>
    %290 = vector.extract_strided_slice %288 {offsets = [0, 128], sizes = [8, 256], strides = [1, 1]} : vector<8x384xf32> to vector<8x256xf32>
    %291 = arith.addf %290, %15 : vector<8x256xf32>
    %292 = math.tanh %291 : vector<8x256xf32>
    %cst_48 = arith.constant dense<0.000000e+00> : vector<8x128xf32>
    %293 = tpu.matmul %292, %4, %cst_48 {dimension_numbers = #tpu.dot_dimension_numbers<[1], [0], [0], [1], [0, 0, 1, 1], [], []>} : vector<8x256xf32>, vector<256x128xf32>, vector<8x128xf32> -> vector<8x128xf32>
    %294 = vector.extract_strided_slice %293 {offsets = [0, 0], sizes = [8, 8], strides = [1, 1]} : vector<8x128xf32> to vector<8x8xf32>
    %cst_49 = arith.constant dense<0xFF800000> : vector<8xf32>
    %295 = vector.multi_reduction <maximumf>, %294, %cst_49 [1] : vector<8x8xf32> to vector<8xf32>
    %296 = vector.shape_cast %295 : vector<8xf32> to vector<8x1xf32>
    %297 = vector.broadcast %296 : vector<8x1xf32> to vector<8x8xf32>
    %298 = arith.subf %294, %297 : vector<8x8xf32>
    %299 = math.exp %298 : vector<8x8xf32>
    %cst_50 = arith.constant dense<0.000000e+00> : vector<8xf32>
    %300 = vector.multi_reduction <add>, %299, %cst_50 [1] : vector<8x8xf32> to vector<8xf32>
    %301 = vector.shape_cast %300 : vector<8xf32> to vector<8x1xf32>
    %302 = tpu.reciprocal %301 : vector<8x1xf32> -> vector<8x1xf32>
    %303 = arith.mulf %299, %17 : vector<8x8xf32>
    %cst_51 = arith.constant dense<0.000000e+00> : vector<8xf32>
    %304 = vector.multi_reduction <add>, %303, %cst_51 [1] : vector<8x8xf32> to vector<8xf32>
    %305 = vector.shape_cast %304 : vector<8xf32> to vector<8x1xf32>
    %306 = arith.mulf %305, %302 : vector<8x1xf32>
    %307 = vector.extract_strided_slice %22 {offsets = [0, 6], sizes = [8, 1], strides = [1, 1]} : vector<8x8xf32> to vector<8x1xf32>
    %308 = arith.addf %306, %307 : vector<8x1xf32>
    %309 = vector.broadcast %308 : vector<8x1xf32> to vector<8x128xf32>
    %310 = vector.broadcast %7 : vector<1x128xf32> to vector<8x128xf32>
    %311 = arith.mulf %309, %310 : vector<8x128xf32>
    %312 = arith.addf %311, %289 : vector<8x128xf32>
    %313 = vector.broadcast %8 : vector<1x128xf32> to vector<8x128xf32>
    %314 = arith.addf %312, %313 : vector<8x128xf32>
    %315 = arith.negf %314 : vector<8x128xf32>
    %316 = math.exp %315 : vector<8x128xf32>
    %cst_52 = arith.constant 1.000000e+00 : f32
    %317 = vector.broadcast %cst_52 : f32 to vector<8x128xf32>
    %318 = arith.addf %317, %316 : vector<8x128xf32>
    %319 = arith.divf %317, %318 : vector<8x128xf32>
    %320 = math.tanh %314 : vector<8x128xf32>
    %321 = vector.extract_strided_slice %319 {offsets = [0, 0], sizes = [8, 32], strides = [1, 1]} : vector<8x128xf32> to vector<8x32xf32>
    %322 = vector.extract_strided_slice %319 {offsets = [0, 32], sizes = [8, 32], strides = [1, 1]} : vector<8x128xf32> to vector<8x32xf32>
    %323 = vector.extract_strided_slice %320 {offsets = [0, 64], sizes = [8, 32], strides = [1, 1]} : vector<8x128xf32> to vector<8x32xf32>
    %324 = vector.extract_strided_slice %319 {offsets = [0, 96], sizes = [8, 32], strides = [1, 1]} : vector<8x128xf32> to vector<8x32xf32>
    %325 = vector.extract_strided_slice %287 {offsets = [0, 32], sizes = [8, 32], strides = [1, 1]} : vector<8x64xf32> to vector<8x32xf32>
    %326 = arith.mulf %322, %325 : vector<8x32xf32>
    %327 = arith.mulf %321, %323 : vector<8x32xf32>
    %328 = arith.addf %326, %327 : vector<8x32xf32>
    %329 = math.tanh %328 : vector<8x32xf32>
    %330 = arith.mulf %324, %329 : vector<8x32xf32>
    %331 = tpu.concatenate %330, %328 in 1 : vector<8x32xf32>, vector<8x32xf32> -> vector<8x64xf32>
    %332 = vector.extract_strided_slice %331 {offsets = [0, 0], sizes = [8, 32], strides = [1, 1]} : vector<8x64xf32> to vector<8x32xf32>
    %333 = vector.broadcast %9 : vector<1x32xf32> to vector<8x32xf32>
    %334 = arith.mulf %332, %333 : vector<8x32xf32>
    %cst_53 = arith.constant dense<0.000000e+00> : vector<8xf32>
    %335 = vector.multi_reduction <add>, %334, %cst_53 [1] : vector<8x32xf32> to vector<8xf32>
    %336 = vector.shape_cast %335 : vector<8xf32> to vector<8x1xf32>
    %337 = arith.mulf %299, %18 : vector<8x8xf32>
    %cst_54 = arith.constant dense<0.000000e+00> : vector<8xf32>
    %338 = vector.multi_reduction <add>, %337, %cst_54 [1] : vector<8x8xf32> to vector<8xf32>
    %339 = vector.shape_cast %338 : vector<8xf32> to vector<8x1xf32>
    %340 = arith.mulf %339, %302 : vector<8x1xf32>
    %341 = arith.addf %336, %340 : vector<8x1xf32>
    %342 = vector.broadcast %12 : f32 to vector<8x1xf32>
    %343 = arith.addf %341, %342 : vector<8x1xf32>
    %c0_55 = arith.constant 0 : index
    %c0_56 = arith.constant 0 : index
    %344 = vector.load %arg4[%c0_55, %c0_56] : memref<8x1xf32, #tpu.memory_space<vmem>>, vector<8x1xf32>
    tpu.vector_store %arg4[%c0_55, %c0_56], %343 {strides = array<i32>} : memref<8x1xf32, #tpu.memory_space<vmem>>, vector<8x1xf32>,
    return
  }
}

</mosaic_0001>

<llo_original>
// kernel: tpu_custom_call.1
$region0: #{tpu_custom_call.1}
  #allocation0 [shape = 'u32[]', space=smem, size = 0x4, offset = 0x4, fixed_abs, tag = 'smem constant byte address 0x4 - core index']
  #allocation1 [shape = 'u32[144,128]{1,0:T(1,128)}', space=vmem, size = 0x12000, scoped, tag = 'internal scratch']
  %s0 = inlined_call_operand.hbm [shape: f32[8,256], index: 0, kind: input, shape index: {}]
  %s1 = inlined_call_operand.hbm [shape: f32[8,8], index: 1, kind: input, shape index: {}]
  %s2 = inlined_call_operand.hbm [shape: f32[584,384], index: 2, kind: input, shape index: {}]
  %s3 = inlined_call_operand.vmem [shape: f32[3], index: 3, kind: input, shape index: {}]
  %s4 = inlined_call_operand.vmem [shape: f32[8,1], index: 4, kind: output, shape index: {}]
  %s5 = sld [smem:[#allocation0]]
  $region42: #{tpu_custom_call.1} parent=0
    _
  %s7 = ssub.s32 1, %s5
  %s8 = scalar_select 0, %s7, %s5
  $region1: #{tpu_custom_call.1} parent=0
    #allocation2 [shape = 'u8[8192]{0}', space=vmem, size = 0x2000, scoped, tag = 'input window, operand 0, single buffered']
    #allocation3 [shape = 's32[1]{0}', space=sflag, size = 0x4, scoped, tag = 'scoped memory for tpu_custom_call.1']
    #allocation4 [shape = 's32[1]{0}', space=sflag, size = 0x4, scoped, tag = 'scoped memory for tpu_custom_call.1']
    #allocation5 [shape = 'u8[4096]{0}', space=vmem, size = 0x1000, scoped, tag = 'input window, operand 1, single buffered']
    #allocation6 [shape = 's32[1]{0}', space=sflag, size = 0x4, scoped, tag = 'scoped memory for tpu_custom_call.1']
    #allocation7 [shape = 'u8[897024]{0}', space=vmem, size = 0xdb000, scoped, tag = 'input window, operand 2, single buffered']
    #allocation8 [shape = 'u8[512]{0}', space=smem, size = 0x200, scoped, tag = 'input window, operand 3, single buffered']
    %9 = vsyncpa [#allocation3], 0
    %10 = vsyncpa [#allocation6], 0
    %11 = vsyncpa [#allocation4], 0
    // Predicated region
    $region2: #{tpu_custom_call.1} parent=1 // pred_check
      _
    $region3: #{tpu_custom_call.1} parent=1 // pred_check_branch
      %13 = sbr.rel (0) target = $region5
    $region4: #{tpu_custom_call.1} parent=1 // pred_region
      %s15 = ssub.s32 256, 256
      %16 = vsyncadd [#allocation3], %s15
      %s18 = sshll.u32 [#allocation2], 4
      %s19 = int_to_ptr.vmem [resolvable:$true] %s18
      %21 = dma.hbm_to_vmem [thread:$0]  %s0, 256, %s19, [#allocation3]
    $region5: #{tpu_custom_call.1} parent=1 // pred_fallthru
      _
    // Predicated region
    $region6: #{tpu_custom_call.1} parent=1 // pred_check
      _
    $region7: #{tpu_custom_call.1} parent=1 // pred_check_branch
      %23 = sbr.rel (0) target = $region9
    $region8: #{tpu_custom_call.1} parent=1 // pred_region
      %s25 = ssub.s32 128, 128
      %26 = vsyncadd [#allocation6], %s25
      %s28 = sshll.u32 [#allocation5], 4
      %s29 = int_to_ptr.vmem [resolvable:$true] %s28
      %31 = dma.hbm_to_vmem [thread:$0]  %s1, 128, %s29, [#allocation6]
    $region9: #{tpu_custom_call.1} parent=1 // pred_fallthru
      _
    // Predicated region
    $region10: #{tpu_custom_call.1} parent=1 // pred_check
      _
    $region11: #{tpu_custom_call.1} parent=1 // pred_check_branch
      %33 = sbr.rel (0) target = $region13
    $region12: #{tpu_custom_call.1} parent=1 // pred_region
      %s35 = ssub.s32 28032, 28032
      %36 = vsyncadd [#allocation6], %s35
      %s37 = sshll.u32 [#allocation7], 4
      %s38 = int_to_ptr.vmem [resolvable:$true] %s37
      %43 = dma.hbm_to_vmem [thread:$0]  %s2, 28032, %s38, [#allocation6], 384, 384, 24
    $region13: #{tpu_custom_call.1} parent=1 // pred_fallthru
      _
    // Predicated region
    $region14: #{tpu_custom_call.1} parent=1 // pred_check
      _
    $region15: #{tpu_custom_call.1} parent=1 // pred_check_branch
      %45 = sbr.rel (0) target = $region17
    $region16: #{tpu_custom_call.1} parent=1 // pred_region
      %s47 = ssub.s32 16, 16
      %48 = vsyncadd [#allocation4], %s47
      %s50 = sshll.u32 %s3, 4
      %s51 = int_to_ptr.vmem [resolvable:$true] %s50
      %53 = dma.vmem_to_smem %s51, 16, [#allocation8], [#allocation4]
    $region17: #{tpu_custom_call.1} parent=1 // pred_fallthru
      _
    // Predicated region
    $region18: #{tpu_custom_call.1} parent=1 // pred_check
      _
    $region19: #{tpu_custom_call.1} parent=1 // pred_check_branch
      %55 = sbr.rel (0) target = $region21
    $region20: #{tpu_custom_call.1} parent=1 // pred_region
      %56 = dma.done [#allocation3], 256
    $region21: #{tpu_custom_call.1} parent=1 // pred_fallthru
      _
    // Predicated region
    $region22: #{tpu_custom_call.1} parent=1 // pred_check
      _
    $region23: #{tpu_custom_call.1} parent=1 // pred_check_branch
      %58 = sbr.rel (0) target = $region25
    $region24: #{tpu_custom_call.1} parent=1 // pred_region
      %59 = dma.done [#allocation6], 128
    $region25: #{tpu_custom_call.1} parent=1 // pred_fallthru
      _
    // Predicated region
    $region26: #{tpu_custom_call.1} parent=1 // pred_check
      _
    $region27: #{tpu_custom_call.1} parent=1 // pred_check_branch
      %61 = sbr.rel (0) target = $region29
    $region28: #{tpu_custom_call.1} parent=1 // pred_region
      %62 = dma.done [#allocation6], 28032
    $region29: #{tpu_custom_call.1} parent=1 // pred_fallthru
      _
    // Predicated region
    $region30: #{tpu_custom_call.1} parent=1 // pred_check
      _
    $region31: #{tpu_custom_call.1} parent=1 // pred_check_branch
      %64 = sbr.rel (0) target = $region33
    $region32: #{tpu_custom_call.1} parent=1 // pred_region
      %65 = dma.done [#allocation4], 16
    $region33: #{tpu_custom_call.1} parent=1 // pred_fallthru
      _
    %66 = sfence
    %v67 = vld [vmem:[#allocation2] sm:$0xff]
    %v68 = vld [vmem:[#allocation2 + $0x8] sm:$0xff]
    %v69 = vld [vmem:[#allocation5] sm:$0xff]
    %v70 = vld [vmem:[#allocation7] sm:$0xff]
    %v71 = vld [vmem:[#allocation7 + $0x8] sm:$0xff]
    %v72 = vld [vmem:[#allocation7 + $0x10] sm:$0xff]
    %v73 = vld [vmem:[#allocation7 + $0x18] sm:$0xff]
    %v74 = vld [vmem:[#allocation7 + $0x20] sm:$0xff]
    %v75 = vld [vmem:[#allocation7 + $0x28] sm:$0xff]
    %v76 = vld [vmem:[#allocation7 + $0x30] sm:$0xff]
    %v77 = vld [vmem:[#allocation7 + $0x38] sm:$0xff]
    %v78 = vld [vmem:[#allocation7 + $0x40] sm:$0xff]
    %v79 = vld [vmem:[#allocation7 + $0x48] sm:$0xff]
    %v80 = vld [vmem:[#allocation7 + $0x50] sm:$0xff]
    %v81 = vld [vmem:[#allocation7 + $0x58] sm:$0xff]
    %v82 = vld [vmem:[#allocation7 + $0x60] sm:$0xff]
    %v83 = vld [vmem:[#allocation7 + $0x68] sm:$0xff]
    %v84 = vld [vmem:[#allocation7 + $0x70] sm:$0xff]
    %v85 = vld [vmem:[#allocation7 + $0x78] sm:$0xff]
    %v86 = vld [vmem:[#allocation7 + $0x80] sm:$0xff]
    %v87 = vld [vmem:[#allocation7 + $0x88] sm:$0xff]
    %v88 = vld [vmem:[#allocation7 + $0x90] sm:$0xff]
    %v89 = vld [vmem:[#allocation7 + $0x98] sm:$0xff]
    %v90 = vld [vmem:[#allocation7 + $0xa0] sm:$0xff]
    %v91 = vld [vmem:[#allocation7 + $0xa8] sm:$0xff]
    %v92 = vld [vmem:[#allocation7 + $0xb0] sm:$0xff]
    %v93 = vld [vmem:[#allocation7 + $0xb8] sm:$0xff]
    %v94 = vld [vmem:[#allocation7 + $0xc0] sm:$0xff]
    %v95 = vld [vmem:[#allocation7 + $0xc8] sm:$0xff]
    %v96 = vld [vmem:[#allocation7 + $0xd8] sm:$0xff]
    %v97 = vld [vmem:[#allocation7 + $0xe0] sm:$0xff]
    %v98 = vld [vmem:[#allocation7 + $0xf0] sm:$0xff]
    %v99 = vld [vmem:[#allocation7 + $0xf8] sm:$0xff]
    %v100 = vld [vmem:[#allocation7 + $0x108] sm:$0xff]
    %v101 = vld [vmem:[#allocation7 + $0x110] sm:$0xff]
    %v102 = vld [vmem:[#allocation7 + $0x120] sm:$0xff]
    %v103 = vld [vmem:[#allocation7 + $0x128] sm:$0xff]
    %v104 = vld [vmem:[#allocation7 + $0x138] sm:$0xff]
    %v105 = vld [vmem:[#allocation7 + $0x140] sm:$0xff]
    %v106 = vld [vmem:[#allocation7 + $0x150] sm:$0xff]
    %v107 = vld [vmem:[#allocation7 + $0x158] sm:$0xff]
    %v108 = vld [vmem:[#allocation7 + $0x168] sm:$0xff]
    %v109 = vld [vmem:[#allocation7 + $0x170] sm:$0xff]
    %v110 = vld [vmem:[#allocation7 + $0x180] sm:$0xff]
    %v111 = vld [vmem:[#allocation7 + $0x188] sm:$0xff]
    %v112 = vld [vmem:[#allocation7 + $0x198] sm:$0xff]
    %v113 = vld [vmem:[#allocation7 + $0x1a0] sm:$0xff]
    %v114 = vld [vmem:[#allocation7 + $0x1b0] sm:$0xff]
    %v115 = vld [vmem:[#allocation7 + $0x1b8] sm:$0xff]
    %v116 = vld [vmem:[#allocation7 + $0x1c8] sm:$0xff]
    %v117 = vld [vmem:[#allocation7 + $0x1d0] sm:$0xff]
    %v118 = vld [vmem:[#allocation7 + $0x1e0] sm:$0xff]
    %v119 = vld [vmem:[#allocation7 + $0x1e8] sm:$0xff]
    %v120 = vld [vmem:[#allocation7 + $0x1f8] sm:$0xff]
    %v121 = vld [vmem:[#allocation7 + $0x200] sm:$0xff]
    %v122 = vld [vmem:[#allocation7 + $0x210] sm:$0xff]
    %v123 = vld [vmem:[#allocation7 + $0x218] sm:$0xff]
    %v124 = vld [vmem:[#allocation7 + $0x228] sm:$0xff]
    %v125 = vld [vmem:[#allocation7 + $0x230] sm:$0xff]
    %v126 = vld [vmem:[#allocation7 + $0x240] sm:$0xff]
    %v127 = vld [vmem:[#allocation7 + $0x248] sm:$0xff]
    %v128 = vld [vmem:[#allocation7 + $0x258] sm:$0xff]
    %v129 = vld [vmem:[#allocation7 + $0x260] sm:$0xff]
    %v130 = vld [vmem:[#allocation7 + $0x270] sm:$0xff]
    %v131 = vld [vmem:[#allocation7 + $0x278] sm:$0xff]
    %v132 = vld [vmem:[#allocation7 + $0x288] sm:$0xff]
    %v133 = vld [vmem:[#allocation7 + $0x290] sm:$0xff]
    %v134 = vld [vmem:[#allocation7 + $0x2a0] sm:$0xff]
    %v135 = vld [vmem:[#allocation7 + $0x2a8] sm:$0xff]
    %v136 = vld [vmem:[#allocation7 + $0x2b8] sm:$0xff]
    %v137 = vld [vmem:[#allocation7 + $0x2c0] sm:$0xff]
    %v138 = vld [vmem:[#allocation7 + $0x2d0] sm:$0xff]
    %v139 = vld [vmem:[#allocation7 + $0x2d8] sm:$0xff]
    %v140 = vld [vmem:[#allocation7 + $0x2e8] sm:$0xff]
    %v141 = vld [vmem:[#allocation7 + $0x2f0] sm:$0xff]
    %v142 = vld [vmem:[#allocation7 + $0x300] sm:$0xff]
    %v143 = vld [vmem:[#allocation7 + $0x308] sm:$0xff]
    %v144 = vld [vmem:[#allocation7 + $0x318] sm:$0xff]
    %v145 = vld [vmem:[#allocation7 + $0x320] sm:$0xff]
    %v146 = vld [vmem:[#allocation7 + $0x330] sm:$0xff]
    %v147 = vld [vmem:[#allocation7 + $0x338] sm:$0xff]
    %v148 = vld [vmem:[#allocation7 + $0x348] sm:$0xff]
    %v149 = vld [vmem:[#allocation7 + $0x350] sm:$0xff]
    %v150 = vld [vmem:[#allocation7 + $0x360] sm:$0xff]
    %v151 = vld [vmem:[#allocation7 + $0x368] sm:$0xff]
    %v152 = vld [vmem:[#allocation7 + $0x378] sm:$0xff]
    %v153 = vld [vmem:[#allocation7 + $0x380] sm:$0xff]
    %v154 = vld [vmem:[#allocation7 + $0x390] sm:$0xff]
    %v155 = vld [vmem:[#allocation7 + $0x398] sm:$0xff]
    %v156 = vld [vmem:[#allocation7 + $0x3a8] sm:$0xff]
    %v157 = vld [vmem:[#allocation7 + $0x3b0] sm:$0xff]
    %v158 = vld [vmem:[#allocation7 + $0x3c0] sm:$0xff]
    %v159 = vld [vmem:[#allocation7 + $0x3d8] sm:$0xff]
    %v160 = vld [vmem:[#allocation7 + $0x3f0] sm:$0xff]
    %v161 = vld [vmem:[#allocation7 + $0x408] sm:$0xff]
    %v162 = vld [vmem:[#allocation7 + $0x420] sm:$0xff]
    %v163 = vld [vmem:[#allocation7 + $0x438] sm:$0xff]
    %v164 = vld [vmem:[#allocation7 + $0x450] sm:$0xff]
    %v165 = vld [vmem:[#allocation7 + $0x468] sm:$0xff]
    %v166 = vld [vmem:[#allocation7 + $0x480] sm:$0xff]
    %v167 = vld [vmem:[#allocation7 + $0x498] sm:$0xff]
    %v168 = vld [vmem:[#allocation7 + $0x4b0] sm:$0xff]
    %v169 = vld [vmem:[#allocation7 + $0x4c8] sm:$0xff]
    %v170 = vld [vmem:[#allocation7 + $0x4e0] sm:$0xff]
    %v171 = vld [vmem:[#allocation7 + $0x4f8] sm:$0xff]
    %v172 = vld [vmem:[#allocation7 + $0x510] sm:$0xff]
    %v173 = vld [vmem:[#allocation7 + $0x528] sm:$0xff]
    %v174 = vld [vmem:[#allocation7 + $0x540] sm:$0xff]
    %v175 = vld [vmem:[#allocation7 + $0x558] sm:$0xff]
    %v176 = vld [vmem:[#allocation7 + $0x570] sm:$0xff]
    %v177 = vld [vmem:[#allocation7 + $0x588] sm:$0xff]
    %v178 = vld [vmem:[#allocation7 + $0x5a0] sm:$0xff]
    %v179 = vld [vmem:[#allocation7 + $0x5b8] sm:$0xff]
    %v180 = vld [vmem:[#allocation7 + $0x5d0] sm:$0xff]
    %v181 = vld [vmem:[#allocation7 + $0x5e8] sm:$0xff]
    %v182 = vld [vmem:[#allocation7 + $0x600] sm:$0xff]
    %v183 = vld [vmem:[#allocation7 + $0x618] sm:$0xff]
    %v184 = vld [vmem:[#allocation7 + $0x630] sm:$0xff]
    %v185 = vld [vmem:[#allocation7 + $0x648] sm:$0xff]
    %v186 = vld [vmem:[#allocation7 + $0x660] sm:$0xff]
    %v187 = vld [vmem:[#allocation7 + $0x678] sm:$0xff]
    %v188 = vld [vmem:[#allocation7 + $0x690] sm:$0xff]
    %v189 = vld [vmem:[#allocation7 + $0x6a8] sm:$0xff]
    %v190 = vld [vmem:[#allocation7 + $0x6c0] sm:$0xff]
    %v191 = vld [vmem:[#allocation7 + $0x6c8] sm:$0xff]
    %s192 = sld [smem:[#allocation8]]
    %s193 = sld [smem:[#allocation8 + $0x1]]
    %s194 = sld [smem:[#allocation8 + $0x2]]
    %v195 = vlaneseq
    %v196 = vshrl.u32 %v195, 7
    %v197 = vsub.s32 0, %v196
    %v198 = vrot.slane %v190, %v197
    %v199 = vlaneseq
    %v200 = vshrl.u32 %v199, 7
    %v201 = vsub.s32 0, %v200
    %v202 = vrot.slane %v191, %v201
    %203 = vmatprep.subr.mxu0 %v95
    %204 = vmatpush1.msra.mxu0 %v94
    %205 = vmatprep.subr.mxu0 %v97
    %206 = vmatpush1.msra.mxu0 %v96
    %207 = vmatprep.subr.mxu0 %v99
    %208 = vmatpush1.msra.mxu0 %v98
    %209 = vmatprep.subr.mxu0 %v101
    %210 = vmatpush1.msra.mxu0 %v100
    %211 = vmatprep.subr.mxu0 %v103
    %212 = vmatpush1.msra.mxu0 %v102
    %213 = vmatprep.subr.mxu0 %v105
    %214 = vmatpush1.msra.mxu0 %v104
    %215 = vmatprep.subr.mxu0 %v107
    %216 = vmatpush1.msra.mxu0 %v106
    %217 = vmatprep.subr.mxu0 %v109
    %218 = vmatpush1.msra.mxu0 %v108
    %219 = vmatprep.subr.mxu0 %v111
    %220 = vmatpush1.msra.mxu0 %v110
    %221 = vmatprep.subr.mxu0 %v113
    %222 = vmatpush1.msra.mxu0 %v112
    %223 = vmatprep.subr.mxu0 %v115
    %224 = vmatpush1.msra.mxu0 %v114
    %225 = vmatprep.subr.mxu0 %v117
    %226 = vmatpush1.msra.mxu0 %v116
    %227 = vmatprep.subr.mxu0 %v119
    %228 = vmatpush1.msra.mxu0 %v118
    %229 = vmatprep.subr.mxu0 %v121
    %230 = vmatpush1.msra.mxu0 %v120
    %231 = vmatprep.subr.mxu0 %v123
    %232 = vmatpush1.msra.mxu0 %v122
    %233 = vmatprep.subr.mxu0 %v125
    %234 = vmatpush1.msra.mxu0 %v124
    %235 = vmatprep.subr.mxu0 %v127
    %236 = vmatpush1.msra.mxu0 %v126
    %237 = vmatprep.subr.mxu0 %v129
    %238 = vmatpush1.msra.mxu0 %v128
    %239 = vmatprep.subr.mxu0 %v131
    %240 = vmatpush1.msra.mxu0 %v130
    %241 = vmatprep.subr.mxu0 %v133
    %242 = vmatpush1.msra.mxu0 %v132
    %243 = vmatprep.subr.mxu0 %v135
    %244 = vmatpush1.msra.mxu0 %v134
    %245 = vmatprep.subr.mxu0 %v137
    %246 = vmatpush1.msra.mxu0 %v136
    %247 = vmatprep.subr.mxu0 %v139
    %248 = vmatpush1.msra.mxu0 %v138
    %249 = vmatprep.subr.mxu0 %v141
    %250 = vmatpush1.msra.mxu0 %v140
    %251 = vmatprep.subr.mxu0 %v143
    %252 = vmatpush1.msra.mxu0 %v142
    %253 = vmatprep.subr.mxu0 %v145
    %254 = vmatpush1.msra.mxu0 %v144
    %255 = vmatprep.subr.mxu0 %v147
    %256 = vmatpush1.msra.mxu0 %v146
    %257 = vmatprep.subr.mxu0 %v149
    %258 = vmatpush1.msra.mxu0 %v148
    %259 = vmatprep.subr.mxu0 %v151
    %260 = vmatpush1.msra.mxu0 %v150
    %261 = vmatprep.subr.mxu0 %v153
    %262 = vmatpush1.msra.mxu0 %v152
    %263 = vmatprep.subr.mxu0 %v155
    %264 = vmatpush1.msra.mxu0 %v154
    %265 = vmatprep.subr.mxu0 %v157
    %266 = vmatpush1.msra.mxu0 %v156
    %267 = vmatprep.mubr.f32.mxu0 %v68
    %268 = vmatmul.mubr.f32.gmra.mrb[0].mxu0 %v67
    %v269 = vpop.f32.mrb[0].mxu0
    %v270 = vadd.f32 %v198, %v269
    %v271 = vpop.f32.mrb[0].mxu0
    %v272 = vadd.f32 %v202, %v271
    %273 = vdwg.mxu0
    %274 = vmatprep.subr.mxu0 0.0
    %275 = vmatpush1.msra.mxu0 %v158
    %276 = vmatprep.subr.mxu0 0.0
    %277 = vmatpush1.msra.mxu0 %v159
    %278 = vmatprep.subr.mxu0 0.0
    %279 = vmatpush1.msra.mxu0 %v160
    %280 = vmatprep.subr.mxu0 0.0
    %281 = vmatpush1.msra.mxu0 %v161
    %282 = vmatprep.subr.mxu0 0.0
    %283 = vmatpush1.msra.mxu0 %v162
    %284 = vmatprep.subr.mxu0 0.0
    %285 = vmatpush1.msra.mxu0 %v163
    %286 = vmatprep.subr.mxu0 0.0
    %287 = vmatpush1.msra.mxu0 %v164
    %288 = vmatprep.subr.mxu0 0.0
    %289 = vmatpush1.msra.mxu0 %v165
    %290 = vmatprep.subr.mxu0 0.0
    %291 = vmatpush1.msra.mxu0 %v166
    %292 = vmatprep.subr.mxu0 0.0
    %293 = vmatpush1.msra.mxu0 %v167
    %294 = vmatprep.subr.mxu0 0.0
    %295 = vmatpush1.msra.mxu0 %v168
    %296 = vmatprep.subr.mxu0 0.0
    %297 = vmatpush1.msra.mxu0 %v169
    %298 = vmatprep.subr.mxu0 0.0
    %299 = vmatpush1.msra.mxu0 %v170
    %300 = vmatprep.subr.mxu0 0.0
    %301 = vmatpush1.msra.mxu0 %v171
    %302 = vmatprep.subr.mxu0 0.0
    %303 = vmatpush1.msra.mxu0 %v172
    %304 = vmatprep.subr.mxu0 0.0
    %305 = vmatpush1.msra.mxu0 %v173
    %306 = vmatprep.subr.mxu0 0.0
    %307 = vmatpush1.msra.mxu0 %v174
    %308 = vmatprep.subr.mxu0 0.0
    %309 = vmatpush1.msra.mxu0 %v175
    %310 = vmatprep.subr.mxu0 0.0
    %311 = vmatpush1.msra.mxu0 %v176
    %312 = vmatprep.subr.mxu0 0.0
    %313 = vmatpush1.msra.mxu0 %v177
    %314 = vmatprep.subr.mxu0 0.0
    %315 = vmatpush1.msra.mxu0 %v178
    %316 = vmatprep.subr.mxu0 0.0
    %317 = vmatpush1.msra.mxu0 %v179
    %318 = vmatprep.subr.mxu0 0.0
    %319 = vmatpush1.msra.mxu0 %v180
    %320 = vmatprep.subr.mxu0 0.0
    %321 = vmatpush1.msra.mxu0 %v181
    %322 = vmatprep.subr.mxu0 0.0
    %323 = vmatpush1.msra.mxu0 %v182
    %324 = vmatprep.subr.mxu0 0.0
    %325 = vmatpush1.msra.mxu0 %v183
    %326 = vmatprep.subr.mxu0 0.0
    %327 = vmatpush1.msra.mxu0 %v184
    %328 = vmatprep.subr.mxu0 0.0
    %329 = vmatpush1.msra.mxu0 %v185
    %330 = vmatprep.subr.mxu0 0.0
    %331 = vmatpush1.msra.mxu0 %v186
    %332 = vmatprep.subr.mxu0 0.0
    %333 = vmatpush1.msra.mxu0 %v187
    %334 = vmatprep.subr.mxu0 0.0
    %335 = vmatpush1.msra.mxu0 %v188
    %336 = vmatprep.subr.mxu0 0.0
    %337 = vmatpush1.msra.mxu0 %v189
    %338 = vmatprep.mubr.f32.mxu0 %v68
    %339 = vmatmul.mubr.f32.gmra.mrb[0].mxu0 %v67
    %v340 = vpop.f32.mrb[0].mxu0
    %v341 = vadd.f32 0.0, %v340
    %v342 = vpop.f32.mrb[0].mxu0
    %343 = vdwg.mxu0
    %v344 = vstv %s192
    %v345 = vmul.f32 %v69, %v344
    %v346 = vstv %s193
    %v347 = vadd.f32 %v345, %v346
    %vm348 = vcmask 523264
    %v350 = vsel %vm348, 0.0, 0
    %352 = vmatprep.subr.mxu0 %v71
    %353 = vmatpush1.msra.mxu0 %v70
    %354 = vmatprep.subr.mxu0 %v74
    %355 = vmatpush1.msra.mxu0 %v73
    %356 = vmatprep.subr.mxu0 %v77
    %357 = vmatpush1.msra.mxu0 %v76
    %358 = vmatprep.subr.mxu0 %v80
    %359 = vmatpush1.msra.mxu0 %v79
    %360 = vmatprep.subr.mxu0 %v83
    %361 = vmatpush1.msra.mxu0 %v82
    %362 = vmatprep.subr.mxu0 %v86
    %363 = vmatpush1.msra.mxu0 %v85
    %364 = vmatprep.subr.mxu0 %v89
    %365 = vmatpush1.msra.mxu0 %v88
    %366 = vmatprep.subr.mxu0 %v92
    %367 = vmatpush1.msra.mxu0 %v91
    %368 = vmatprep.subr.mxu0 0.0
    %369 = vmatpush1.msra.mxu0 0.0
    %370 = vmatprep.subr.mxu0 0.0
    %371 = vmatpush1.msra.mxu0 0.0
    %372 = vmatprep.subr.mxu0 0.0
    %373 = vmatpush1.msra.mxu0 0.0
    %374 = vmatprep.subr.mxu0 0.0
    %375 = vmatpush1.msra.mxu0 0.0
    %376 = vmatprep.subr.mxu0 0.0
    %377 = vmatpush1.msra.mxu0 0.0
    %378 = vmatprep.subr.mxu0 0.0
    %379 = vmatpush1.msra.mxu0 0.0
    %380 = vmatprep.subr.mxu0 0.0
    %381 = vmatpush1.msra.mxu0 0.0
    %382 = vmatprep.subr.mxu0 0.0
    %383 = vmatpush1.msra.mxu0 0.0
    %384 = vmatprep.subr.mxu0 0.0
    %385 = vmatpush1.msra.mxu0 0.0
    %386 = vmatprep.subr.mxu0 0.0
    %387 = vmatpush1.msra.mxu0 0.0
    %388 = vmatprep.subr.mxu0 0.0
    %389 = vmatpush1.msra.mxu0 0.0
    %390 = vmatprep.subr.mxu0 0.0
    %391 = vmatpush1.msra.mxu0 0.0
    %392 = vmatprep.subr.mxu0 0.0
    %393 = vmatpush1.msra.mxu0 0.0
    %394 = vmatprep.subr.mxu0 0.0
    %395 = vmatpush1.msra.mxu0 0.0
    %396 = vmatprep.subr.mxu0 0.0
    %397 = vmatpush1.msra.mxu0 0.0
    %398 = vmatprep.subr.mxu0 0.0
    %399 = vmatpush1.msra.mxu0 0.0
    %400 = vmatprep.subr.mxu0 0.0
    %401 = vmatpush1.msra.mxu0 0.0
    %402 = vmatprep.subr.mxu0 0.0
    %403 = vmatpush1.msra.mxu0 0.0
    %404 = vmatprep.subr.mxu0 0.0
    %405 = vmatpush1.msra.mxu0 0.0
    %406 = vmatprep.subr.mxu0 0.0
    %407 = vmatpush1.msra.mxu0 0.0
    %408 = vmatprep.subr.mxu0 0.0
    %409 = vmatpush1.msra.mxu0 0.0
    %410 = vmatprep.subr.mxu0 0.0
    %411 = vmatpush1.msra.mxu0 0.0
    %412 = vmatprep.subr.mxu0 0.0
    %413 = vmatpush1.msra.mxu0 0.0
    %414 = vmatprep.subr.mxu0 0.0
    %415 = vmatpush1.msra.mxu0 0.0
    %416 = vmatprep.mubr.f32.mxu0 0.0
    %417 = vmatmul.mubr.f32.gmra.mrb[0].mxu0 %v350
    %v418 = vpop.f32.mrb[0].mxu0
    %v419 = vadd.f32 0.0, %v418
    %v420 = vpop.f32.mrb[0].mxu0
    %v421 = vadd.f32 0.0, %v420
    %422 = vdwg.mxu0
    %423 = vmatprep.subr.mxu0 0.0
    %424 = vmatpush1.msra.mxu0 %v72
    %425 = vmatprep.subr.mxu0 0.0
    %426 = vmatpush1.msra.mxu0 %v75
    %427 = vmatprep.subr.mxu0 0.0
    %428 = vmatpush1.msra.mxu0 %v78
    %429 = vmatprep.subr.mxu0 0.0
    %430 = vmatpush1.msra.mxu0 %v81
    %431 = vmatprep.subr.mxu0 0.0
    %432 = vmatpush1.msra.mxu0 %v84
    %433 = vmatprep.subr.mxu0 0.0
    %434 = vmatpush1.msra.mxu0 %v87
    %435 = vmatprep.subr.mxu0 0.0
    %436 = vmatpush1.msra.mxu0 %v90
    %437 = vmatprep.subr.mxu0 0.0
    %438 = vmatpush1.msra.mxu0 %v93
    %439 = vmatprep.subr.mxu0 0.0
    %440 = vmatpush1.msra.mxu0 0.0
    %441 = vmatprep.subr.mxu0 0.0
    %442 = vmatpush1.msra.mxu0 0.0
    %443 = vmatprep.subr.mxu0 0.0
    %444 = vmatpush1.msra.mxu0 0.0
    %445 = vmatprep.subr.mxu0 0.0
    %446 = vmatpush1.msra.mxu0 0.0
    %447 = vmatprep.subr.mxu0 0.0
    %448 = vmatpush1.msra.mxu0 0.0
    %449 = vmatprep.subr.mxu0 0.0
    %450 = vmatpush1.msra.mxu0 0.0
    %451 = vmatprep.subr.mxu0 0.0
    %452 = vmatpush1.msra.mxu0 0.0
    %453 = vmatprep.subr.mxu0 0.0
    %454 = vmatpush1.msra.mxu0 0.0
    %455 = vmatprep.subr.mxu0 0.0
    %456 = vmatpush1.msra.mxu0 0.0
    %457 = vmatprep.subr.mxu0 0.0
    %458 = vmatpush1.msra.mxu0 0.0
    %459 = vmatprep.subr.mxu0 0.0
    %460 = vmatpush1.msra.mxu0 0.0
    %461 = vmatprep.subr.mxu0 0.0
    %462 = vmatpush1.msra.mxu0 0.0
    %463 = vmatprep.subr.mxu0 0.0
    %464 = vmatpush1.msra.mxu0 0.0
    %465 = vmatprep.subr.mxu0 0.0
    %466 = vmatpush1.msra.mxu0 0.0
    %467 = vmatprep.subr.mxu0 0.0
    %468 = vmatpush1.msra.mxu0 0.0
    %469 = vmatprep.subr.mxu0 0.0
    %470 = vmatpush1.msra.mxu0 0.0
    %471 = vmatprep.subr.mxu0 0.0
    %472 = vmatpush1.msra.mxu0 0.0
    %473 = vmatprep.subr.mxu0 0.0
    %474 = vmatpush1.msra.mxu0 0.0
    %475 = vmatprep.subr.mxu0 0.0
    %476 = vmatpush1.msra.mxu0 0.0
    %477 = vmatprep.subr.mxu0 0.0
    %478 = vmatpush1.msra.mxu0 0.0
    %479 = vmatprep.subr.mxu0 0.0
    %480 = vmatpush1.msra.mxu0 0.0
    %481 = vmatprep.subr.mxu0 0.0
    %482 = vmatpush1.msra.mxu0 0.0
    %483 = vmatprep.subr.mxu0 0.0
    %484 = vmatpush1.msra.mxu0 0.0
    %485 = vmatprep.subr.mxu0 0.0
    %486 = vmatpush1.msra.mxu0 0.0
    %487 = vmatprep.mubr.f32.mxu0 0.0
    %488 = vmatmul.mubr.f32.gmra.mrb[0].mxu0 %v350
    %v489 = vpop.f32.mrb[0].mxu0
    %v490 = vadd.f32 0.0, %v489
    %v491 = vpop.f32.mrb[0].mxu0
    %492 = vdwg.mxu0
    %v493 = vadd.f32 %v421, %v270
    %v494 = vadd.f32 %v490, %v272
    %v495 = vtanh.pop %v493
    %v496 = vtanh.pop %v494
    %497 = vmatprep.subr.mxu0 0.0
    %498 = vmatpush1.msra.mxu0 %v158
    %499 = vmatprep.subr.mxu0 0.0
    %500 = vmatpush1.msra.mxu0 %v159
    %501 = vmatprep.subr.mxu0 0.0
    %502 = vmatpush1.msra.mxu0 %v160
    %503 = vmatprep.subr.mxu0 0.0
    %504 = vmatpush1.msra.mxu0 %v161
    %505 = vmatprep.subr.mxu0 0.0
    %506 = vmatpush1.msra.mxu0 %v162
    %507 = vmatprep.subr.mxu0 0.0
    %508 = vmatpush1.msra.mxu0 %v163
    %509 = vmatprep.subr.mxu0 0.0
    %510 = vmatpush1.msra.mxu0 %v164
    %511 = vmatprep.subr.mxu0 0.0
    %512 = vmatpush1.msra.mxu0 %v165
    %513 = vmatprep.subr.mxu0 0.0
    %514 = vmatpush1.msra.mxu0 %v166
    %515 = vmatprep.subr.mxu0 0.0
    %516 = vmatpush1.msra.mxu0 %v167
    %517 = vmatprep.subr.mxu0 0.0
    %518 = vmatpush1.msra.mxu0 %v168
    %519 = vmatprep.subr.mxu0 0.0
    %520 = vmatpush1.msra.mxu0 %v169
    %521 = vmatprep.subr.mxu0 0.0
    %522 = vmatpush1.msra.mxu0 %v170
    %523 = vmatprep.subr.mxu0 0.0
    %524 = vmatpush1.msra.mxu0 %v171
    %525 = vmatprep.subr.mxu0 0.0
    %526 = vmatpush1.msra.mxu0 %v172
    %527 = vmatprep.subr.mxu0 0.0
    %528 = vmatpush1.msra.mxu0 %v173
    %529 = vmatprep.subr.mxu0 0.0
    %530 = vmatpush1.msra.mxu0 %v174
    %531 = vmatprep.subr.mxu0 0.0
    %532 = vmatpush1.msra.mxu0 %v175
    %533 = vmatprep.subr.mxu0 0.0
    %534 = vmatpush1.msra.mxu0 %v176
    %535 = vmatprep.subr.mxu0 0.0
    %536 = vmatpush1.msra.mxu0 %v177
    %537 = vmatprep.subr.mxu0 0.0
    %538 = vmatpush1.msra.mxu0 %v178
    %539 = vmatprep.subr.mxu0 0.0
    %540 = vmatpush1.msra.mxu0 %v179
    %541 = vmatprep.subr.mxu0 0.0
    %542 = vmatpush1.msra.mxu0 %v180
    %543 = vmatprep.subr.mxu0 0.0
    %544 = vmatpush1.msra.mxu0 %v181
    %545 = vmatprep.subr.mxu0 0.0
    %546 = vmatpush1.msra.mxu0 %v182
    %547 = vmatprep.subr.mxu0 0.0
    %548 = vmatpush1.msra.mxu0 %v183
    %549 = vmatprep.subr.mxu0 0.0
    %550 = vmatpush1.msra.mxu0 %v184
    %551 = vmatprep.subr.mxu0 0.0
    %552 = vmatpush1.msra.mxu0 %v185
    %553 = vmatprep.subr.mxu0 0.0
    %554 = vmatpush1.msra.mxu0 %v186
    %555 = vmatprep.subr.mxu0 0.0
    %556 = vmatpush1.msra.mxu0 %v187
    %557 = vmatprep.subr.mxu0 0.0
    %558 = vmatpush1.msra.mxu0 %v188
    %559 = vmatprep.subr.mxu0 0.0
    %560 = vmatpush1.msra.mxu0 %v189
    %561 = vmatprep.mubr.f32.mxu0 %v496
    %562 = vmatmul.mubr.f32.gmra.mrb[0].mxu0 %v495
    %v563 = vpop.f32.mrb[0].mxu0
    %v564 = vadd.f32 0.0, %v563
    %v565 = vpop.f32.mrb[0].mxu0
    %566 = vdwg.mxu0
    %vm567 = vcmask 64512
    %v568 = vsel %vm567, %v564, -inf
    %569 = vmax.xlane.f32.xlu0 %v568
    %v570 = vpop.xlane.xlu0 %569
    %v571 = vsub.f32 %v564, %v570
    %v572 = vmul.f32 %v571, 1.442695
    %v573 = vpow.pop %v572
    %v574 = vsel %vm567, %v573, 0.0
    %575 = vadd.xlane.f32.xlu0 %v574
    %v576 = vpop.xlane.xlu0 %575
    %v577 = vrcp.pop %v576
    %579 = vrot.lane.b32.xlu0 %v341, 120
    %v580 = vpop.permute.xlu0 %579
    %v582 = vmul.f32 %v573, %v580
    %v583 = vsel %vm567, %v582, 0.0
    %584 = vadd.xlane.f32.xlu0 %v583
    %v585 = vpop.xlane.xlu0 %584
    %v586 = vmul.f32 %v585, %v577
    %v587 = vadd.f32 %v586, %v347
    %589 = vset.pattern.permute.xlu0 0
    %590 = vperm.xlu0 %589, %v587
    %v591 = vpop.permute.xlu0 %590
    %v593 = vlaneseq
    %v594 = vshrl.u32 %v593, 7
    %v595 = vsub.s32 1, %v594
    %v596 = vrot.slane %v190, %v595
    %v597 = vmul.f32 %v591, %v596
    %v598 = vadd.f32 %v597, %v419
    %v599 = vlaneseq
    %v600 = vshrl.u32 %v599, 7
    %v601 = vsub.s32 2, %v600
    %v602 = vrot.slane %v190, %v601
    %v603 = vadd.f32 %v598, %v602
    %v604 = vxor.u32 %v603, 2147483648
    %v605 = vmul.f32 %v604, 1.442695
    %v606 = vpow.pop %v605
    %v607 = vadd.f32 %v606, 1.0
    %v608 = vrcp.pop %v607
    %v609 = vmul.f32 1.0, %v608
    %v610 = vtanh.pop %v603
    %v611 = vmul.f32 %v609, 0.0
    %613 = vrot.lane.b32.xlu0 %v610, 64
    %v614 = vpop.permute.xlu0 %613
    %v616 = vmul.f32 %v609, %v614
    %618 = vrot.lane.b32.xlu0 %v616, 32
    %v619 = vpop.permute.xlu0 %618
    %v621 = vadd.f32 %v611, %v619
    %v622 = vtanh.pop %v621
    %624 = vrot.lane.b32.xlu0 %v622, 64
    %v625 = vpop.permute.xlu0 %624
    %v627 = vmul.f32 %v609, %v625
    %629 = vrot.lane.b32.xlu0 %v627, 32
    %v630 = vpop.permute.xlu0 %629
    %vm632 = vcmask 261120
    %v633 = vsel %vm632, %v630, %v621
    %v635 = vsel %vm348, %v633, 0
    %637 = vmatprep.subr.mxu0 %v71
    %638 = vmatpush1.msra.mxu0 %v70
    %639 = vmatprep.subr.mxu0 %v74
    %640 = vmatpush1.msra.mxu0 %v73
    %641 = vmatprep.subr.mxu0 %v77
    %642 = vmatpush1.msra.mxu0 %v76
    %643 = vmatprep.subr.mxu0 %v80
    %644 = vmatpush1.msra.mxu0 %v79
    %645 = vmatprep.subr.mxu0 %v83
    %646 = vmatpush1.msra.mxu0 %v82
    %647 = vmatprep.subr.mxu0 %v86
    %648 = vmatpush1.msra.mxu0 %v85
    %649 = vmatprep.subr.mxu0 %v89
    %650 = vmatpush1.msra.mxu0 %v88
    %651 = vmatprep.subr.mxu0 %v92
    %652 = vmatpush1.msra.mxu0 %v91
    %653 = vmatprep.subr.mxu0 0.0
    %654 = vmatpush1.msra.mxu0 0.0
    %655 = vmatprep.subr.mxu0 0.0
    %656 = vmatpush1.msra.mxu0 0.0
    %657 = vmatprep.subr.mxu0 0.0
    %658 = vmatpush1.msra.mxu0 0.0
    %659 = vmatprep.subr.mxu0 0.0
    %660 = vmatpush1.msra.mxu0 0.0
    %661 = vmatprep.subr.mxu0 0.0
    %662 = vmatpush1.msra.mxu0 0.0
    %663 = vmatprep.subr.mxu0 0.0
    %664 = vmatpush1.msra.mxu0 0.0
    %665 = vmatprep.subr.mxu0 0.0
    %666 = vmatpush1.msra.mxu0 0.0
    %667 = vmatprep.subr.mxu0 0.0
    %668 = vmatpush1.msra.mxu0 0.0
    %669 = vmatprep.subr.mxu0 0.0
    %670 = vmatpush1.msra.mxu0 0.0
    %671 = vmatprep.subr.mxu0 0.0
    %672 = vmatpush1.msra.mxu0 0.0
    %673 = vmatprep.subr.mxu0 0.0
    %674 = vmatpush1.msra.mxu0 0.0
    %675 = vmatprep.subr.mxu0 0.0
    %676 = vmatpush1.msra.mxu0 0.0
    %677 = vmatprep.subr.mxu0 0.0
    %678 = vmatpush1.msra.mxu0 0.0
    %679 = vmatprep.subr.mxu0 0.0
    %680 = vmatpush1.msra.mxu0 0.0
    %681 = vmatprep.subr.mxu0 0.0
    %682 = vmatpush1.msra.mxu0 0.0
    %683 = vmatprep.subr.mxu0 0.0
    %684 = vmatpush1.msra.mxu0 0.0
    %685 = vmatprep.subr.mxu0 0.0
    %686 = vmatpush1.msra.mxu0 0.0
    %687 = vmatprep.subr.mxu0 0.0
    %688 = vmatpush1.msra.mxu0 0.0
    %689 = vmatprep.subr.mxu0 0.0
    %690 = vmatpush1.msra.mxu0 0.0
    %691 = vmatprep.subr.mxu0 0.0
    %692 = vmatpush1.msra.mxu0 0.0
    %693 = vmatprep.subr.mxu0 0.0
    %694 = vmatpush1.msra.mxu0 0.0
    %695 = vmatprep.subr.mxu0 0.0
    %696 = vmatpush1.msra.mxu0 0.0
    %697 = vmatprep.subr.mxu0 0.0
    %698 = vmatpush1.msra.mxu0 0.0
    %699 = vmatprep.subr.mxu0 0.0
    %700 = vmatpush1.msra.mxu0 0.0
    %701 = vmatprep.mubr.f32.mxu0 0.0
    %702 = vmatmul.mubr.f32.gmra.mrb[0].mxu0 %v635
    %v703 = vpop.f32.mrb[0].mxu0
    %v704 = vadd.f32 0.0, %v703
    %v705 = vpop.f32.mrb[0].mxu0
    %v706 = vadd.f32 0.0, %v705
    %707 = vdwg.mxu0
    %708 = vmatprep.subr.mxu0 0.0
    %709 = vmatpush1.msra.mxu0 %v72
    %710 = vmatprep.subr.mxu0 0.0
    %711 = vmatpush1.msra.mxu0 %v75
    %712 = vmatprep.subr.mxu0 0.0
    %713 = vmatpush1.msra.mxu0 %v78
    %714 = vmatprep.subr.mxu0 0.0
    %715 = vmatpush1.msra.mxu0 %v81
    %716 = vmatprep.subr.mxu0 0.0
    %717 = vmatpush1.msra.mxu0 %v84
    %718 = vmatprep.subr.mxu0 0.0
    %719 = vmatpush1.msra.mxu0 %v87
    %720 = vmatprep.subr.mxu0 0.0
    %721 = vmatpush1.msra.mxu0 %v90
    %722 = vmatprep.subr.mxu0 0.0
    %723 = vmatpush1.msra.mxu0 %v93
    %724 = vmatprep.subr.mxu0 0.0
    %725 = vmatpush1.msra.mxu0 0.0
    %726 = vmatprep.subr.mxu0 0.0
    %727 = vmatpush1.msra.mxu0 0.0
    %728 = vmatprep.subr.mxu0 0.0
    %729 = vmatpush1.msra.mxu0 0.0
    %730 = vmatprep.subr.mxu0 0.0
    %731 = vmatpush1.msra.mxu0 0.0
    %732 = vmatprep.subr.mxu0 0.0
    %733 = vmatpush1.msra.mxu0 0.0
    %734 = vmatprep.subr.mxu0 0.0
    %735 = vmatpush1.msra.mxu0 0.0
    %736 = vmatprep.subr.mxu0 0.0
    %737 = vmatpush1.msra.mxu0 0.0
    %738 = vmatprep.subr.mxu0 0.0
    %739 = vmatpush1.msra.mxu0 0.0
    %740 = vmatprep.subr.mxu0 0.0
    %741 = vmatpush1.msra.mxu0 0.0
    %742 = vmatprep.subr.mxu0 0.0
    %743 = vmatpush1.msra.mxu0 0.0
    %744 = vmatprep.subr.mxu0 0.0
    %745 = vmatpush1.msra.mxu0 0.0
    %746 = vmatprep.subr.mxu0 0.0
    %747 = vmatpush1.msra.mxu0 0.0
    %748 = vmatprep.subr.mxu0 0.0
    %749 = vmatpush1.msra.mxu0 0.0
    %750 = vmatprep.subr.mxu0 0.0
    %751 = vmatpush1.msra.mxu0 0.0
    %752 = vmatprep.subr.mxu0 0.0
    %753 = vmatpush1.msra.mxu0 0.0
    %754 = vmatprep.subr.mxu0 0.0
    %755 = vmatpush1.msra.mxu0 0.0
    %756 = vmatprep.subr.mxu0 0.0
    %757 = vmatpush1.msra.mxu0 0.0
    %758 = vmatprep.subr.mxu0 0.0
    %759 = vmatpush1.msra.mxu0 0.0
    %760 = vmatprep.subr.mxu0 0.0
    %761 = vmatpush1.msra.mxu0 0.0
    %762 = vmatprep.subr.mxu0 0.0
    %763 = vmatpush1.msra.mxu0 0.0
    %764 = vmatprep.subr.mxu0 0.0
    %765 = vmatpush1.msra.mxu0 0.0
    %766 = vmatprep.subr.mxu0 0.0
    %767 = vmatpush1.msra.mxu0 0.0
    %768 = vmatprep.subr.mxu0 0.0
    %769 = vmatpush1.msra.mxu0 0.0
    %770 = vmatprep.subr.mxu0 0.0
    %771 = vmatpush1.msra.mxu0 0.0
    %772 = vmatprep.mubr.f32.mxu0 0.0
    %773 = vmatmul.mubr.f32.gmra.mrb[0].mxu0 %v635
    %v774 = vpop.f32.mrb[0].mxu0
    %v775 = vadd.f32 0.0, %v774
    %v776 = vpop.f32.mrb[0].mxu0
    %777 = vdwg.mxu0
    %v778 = vadd.f32 %v706, %v270
    %v779 = vadd.f32 %v775, %v272
    %v780 = vtanh.pop %v778
    %v781 = vtanh.pop %v779
    %782 = vmatprep.subr.mxu0 0.0
    %783 = vmatpush1.msra.mxu0 %v158
    %784 = vmatprep.subr.mxu0 0.0
    %785 = vmatpush1.msra.mxu0 %v159
    %786 = vmatprep.subr.mxu0 0.0
    %787 = vmatpush1.msra.mxu0 %v160
    %788 = vmatprep.subr.mxu0 0.0
    %789 = vmatpush1.msra.mxu0 %v161
    %790 = vmatprep.subr.mxu0 0.0
    %791 = vmatpush1.msra.mxu0 %v162
    %792 = vmatprep.subr.mxu0 0.0
    %793 = vmatpush1.msra.mxu0 %v163
    %794 = vmatprep.subr.mxu0 0.0
    %795 = vmatpush1.msra.mxu0 %v164
    %796 = vmatprep.subr.mxu0 0.0
    %797 = vmatpush1.msra.mxu0 %v165
    %798 = vmatprep.subr.mxu0 0.0
    %799 = vmatpush1.msra.mxu0 %v166
    %800 = vmatprep.subr.mxu0 0.0
    %801 = vmatpush1.msra.mxu0 %v167
    %802 = vmatprep.subr.mxu0 0.0
    %803 = vmatpush1.msra.mxu0 %v168
    %804 = vmatprep.subr.mxu0 0.0
    %805 = vmatpush1.msra.mxu0 %v169
    %806 = vmatprep.subr.mxu0 0.0
    %807 = vmatpush1.msra.mxu0 %v170
    %808 = vmatprep.subr.mxu0 0.0
    %809 = vmatpush1.msra.mxu0 %v171
    %810 = vmatprep.subr.mxu0 0.0
    %811 = vmatpush1.msra.mxu0 %v172
    %812 = vmatprep.subr.mxu0 0.0
    %813 = vmatpush1.msra.mxu0 %v173
    %814 = vmatprep.subr.mxu0 0.0
    %815 = vmatpush1.msra.mxu0 %v174
    %816 = vmatprep.subr.mxu0 0.0
    %817 = vmatpush1.msra.mxu0 %v175
    %818 = vmatprep.subr.mxu0 0.0
    %819 = vmatpush1.msra.mxu0 %v176
    %820 = vmatprep.subr.mxu0 0.0
    %821 = vmatpush1.msra.mxu0 %v177
    %822 = vmatprep.subr.mxu0 0.0
    %823 = vmatpush1.msra.mxu0 %v178
    %824 = vmatprep.subr.mxu0 0.0
    %825 = vmatpush1.msra.mxu0 %v179
    %826 = vmatprep.subr.mxu0 0.0
    %827 = vmatpush1.msra.mxu0 %v180
    %828 = vmatprep.subr.mxu0 0.0
    %829 = vmatpush1.msra.mxu0 %v181
    %830 = vmatprep.subr.mxu0 0.0
    %831 = vmatpush1.msra.mxu0 %v182
    %832 = vmatprep.subr.mxu0 0.0
    %833 = vmatpush1.msra.mxu0 %v183
    %834 = vmatprep.subr.mxu0 0.0
    %835 = vmatpush1.msra.mxu0 %v184
    %836 = vmatprep.subr.mxu0 0.0
    %837 = vmatpush1.msra.mxu0 %v185
    %838 = vmatprep.subr.mxu0 0.0
    %839 = vmatpush1.msra.mxu0 %v186
    %840 = vmatprep.subr.mxu0 0.0
    %841 = vmatpush1.msra.mxu0 %v187
    %842 = vmatprep.subr.mxu0 0.0
    %843 = vmatpush1.msra.mxu0 %v188
    %844 = vmatprep.subr.mxu0 0.0
    %845 = vmatpush1.msra.mxu0 %v189
    %846 = vmatprep.mubr.f32.mxu0 %v781
    %847 = vmatmul.mubr.f32.gmra.mrb[0].mxu0 %v780
    %v848 = vpop.f32.mrb[0].mxu0
    %v849 = vadd.f32 0.0, %v848
    %v850 = vpop.f32.mrb[0].mxu0
    %851 = vdwg.mxu0
    %v852 = vsel %vm567, %v849, -inf
    %853 = vmax.xlane.f32.xlu0 %v852
    %v854 = vpop.xlane.xlu0 %853
    %v855 = vsub.f32 %v849, %v854
    %v856 = vmul.f32 %v855, 1.442695
    %v857 = vpow.pop %v856
    %v858 = vsel %vm567, %v857, 0.0
    %859 = vadd.xlane.f32.xlu0 %v858
    %v860 = vpop.xlane.xlu0 %859
    %v861 = vrcp.pop %v860
    %v862 = vmul.f32 %v857, %v580
    %v863 = vsel %vm567, %v862, 0.0
    %864 = vadd.xlane.f32.xlu0 %v863
    %v865 = vpop.xlane.xlu0 %864
    %v866 = vmul.f32 %v865, %v861
    %v867 = vadd.f32 %v866, %v347
    %869 = vset.pattern.permute.xlu0 1
    %870 = vperm.xlu0 %869, %v867
    %v871 = vpop.permute.xlu0 %870
    %v873 = vmul.f32 %v871, %v596
    %v874 = vadd.f32 %v873, %v704
    %v875 = vadd.f32 %v874, %v602
    %v876 = vxor.u32 %v875, 2147483648
    %v877 = vmul.f32 %v876, 1.442695
    %v878 = vpow.pop %v877
    %v879 = vadd.f32 %v878, 1.0
    %v880 = vrcp.pop %v879
    %v881 = vmul.f32 1.0, %v880
    %v882 = vtanh.pop %v875
    %v883 = vmul.f32 %v881, %v633
    %885 = vrot.lane.b32.xlu0 %v882, 64
    %v886 = vpop.permute.xlu0 %885
    %v888 = vmul.f32 %v881, %v886
    %890 = vrot.lane.b32.xlu0 %v888, 32
    %v891 = vpop.permute.xlu0 %890
    %v893 = vadd.f32 %v883, %v891
    %v894 = vtanh.pop %v893
    %896 = vrot.lane.b32.xlu0 %v894, 64
    %v897 = vpop.permute.xlu0 %896
    %v899 = vmul.f32 %v881, %v897
    %901 = vrot.lane.b32.xlu0 %v899, 32
    %v902 = vpop.permute.xlu0 %901
    %v904 = vsel %vm632, %v902, %v893
    %v906 = vsel %vm348, %v904, 0
    %908 = vmatprep.subr.mxu0 %v71
    %909 = vmatpush1.msra.mxu0 %v70
    %910 = vmatprep.subr.mxu0 %v74
    %911 = vmatpush1.msra.mxu0 %v73
    %912 = vmatprep.subr.mxu0 %v77
    %913 = vmatpush1.msra.mxu0 %v76
    %914 = vmatprep.subr.mxu0 %v80
    %915 = vmatpush1.msra.mxu0 %v79
    %916 = vmatprep.subr.mxu0 %v83
    %917 = vmatpush1.msra.mxu0 %v82
    %918 = vmatprep.subr.mxu0 %v86
    %919 = vmatpush1.msra.mxu0 %v85
    %920 = vmatprep.subr.mxu0 %v89
    %921 = vmatpush1.msra.mxu0 %v88
    %922 = vmatprep.subr.mxu0 %v92
    %923 = vmatpush1.msra.mxu0 %v91
    %924 = vmatprep.subr.mxu0 0.0
    %925 = vmatpush1.msra.mxu0 0.0
    %926 = vmatprep.subr.mxu0 0.0
    %927 = vmatpush1.msra.mxu0 0.0
    %928 = vmatprep.subr.mxu0 0.0
    %929 = vmatpush1.msra.mxu0 0.0
    %930 = vmatprep.subr.mxu0 0.0
    %931 = vmatpush1.msra.mxu0 0.0
    %932 = vmatprep.subr.mxu0 0.0
    %933 = vmatpush1.msra.mxu0 0.0
    %934 = vmatprep.subr.mxu0 0.0
    %935 = vmatpush1.msra.mxu0 0.0
    %936 = vmatprep.subr.mxu0 0.0
    %937 = vmatpush1.msra.mxu0 0.0
    %938 = vmatprep.subr.mxu0 0.0
    %939 = vmatpush1.msra.mxu0 0.0
    %940 = vmatprep.subr.mxu0 0.0
    %941 = vmatpush1.msra.mxu0 0.0
    %942 = vmatprep.subr.mxu0 0.0
    %943 = vmatpush1.msra.mxu0 0.0
    %944 = vmatprep.subr.mxu0 0.0
    %945 = vmatpush1.msra.mxu0 0.0
    %946 = vmatprep.subr.mxu0 0.0
    %947 = vmatpush1.msra.mxu0 0.0
    %948 = vmatprep.subr.mxu0 0.0
    %949 = vmatpush1.msra.mxu0 0.0
    %950 = vmatprep.subr.mxu0 0.0
    %951 = vmatpush1.msra.mxu0 0.0
    %952 = vmatprep.subr.mxu0 0.0
    %953 = vmatpush1.msra.mxu0 0.0
    %954 = vmatprep.subr.mxu0 0.0
    %955 = vmatpush1.msra.mxu0 0.0
    %956 = vmatprep.subr.mxu0 0.0
    %957 = vmatpush1.msra.mxu0 0.0
    %958 = vmatprep.subr.mxu0 0.0
    %959 = vmatpush1.msra.mxu0 0.0
    %960 = vmatprep.subr.mxu0 0.0
    %961 = vmatpush1.msra.mxu0 0.0
    %962 = vmatprep.subr.mxu0 0.0
    %963 = vmatpush1.msra.mxu0 0.0
    %964 = vmatprep.subr.mxu0 0.0
    %965 = vmatpush1.msra.mxu0 0.0
    %966 = vmatprep.subr.mxu0 0.0
    %967 = vmatpush1.msra.mxu0 0.0
    %968 = vmatprep.subr.mxu0 0.0
    %969 = vmatpush1.msra.mxu0 0.0
    %970 = vmatprep.subr.mxu0 0.0
    %971 = vmatpush1.msra.mxu0 0.0
    %972 = vmatprep.mubr.f32.mxu0 0.0
    %973 = vmatmul.mubr.f32.gmra.mrb[0].mxu0 %v906
    %v974 = vpop.f32.mrb[0].mxu0
    %v975 = vadd.f32 0.0, %v974
    %v976 = vpop.f32.mrb[0].mxu0
    %v977 = vadd.f32 0.0, %v976
    %978 = vdwg.mxu0
    %979 = vmatprep.subr.mxu0 0.0
    %980 = vmatpush1.msra.mxu0 %v72
    %981 = vmatprep.subr.mxu0 0.0
    %982 = vmatpush1.msra.mxu0 %v75
    %983 = vmatprep.subr.mxu0 0.0
    %984 = vmatpush1.msra.mxu0 %v78
    %985 = vmatprep.subr.mxu0 0.0
    %986 = vmatpush1.msra.mxu0 %v81
    %987 = vmatprep.subr.mxu0 0.0
    %988 = vmatpush1.msra.mxu0 %v84
    %989 = vmatprep.subr.mxu0 0.0
    %990 = vmatpush1.msra.mxu0 %v87
    %991 = vmatprep.subr.mxu0 0.0
    %992 = vmatpush1.msra.mxu0 %v90
    %993 = vmatprep.subr.mxu0 0.0
    %994 = vmatpush1.msra.mxu0 %v93
    %995 = vmatprep.subr.mxu0 0.0
    %996 = vmatpush1.msra.mxu0 0.0
    %997 = vmatprep.subr.mxu0 0.0
    %998 = vmatpush1.msra.mxu0 0.0
    %999 = vmatprep.subr.mxu0 0.0
    %1000 = vmatpush1.msra.mxu0 0.0
    %1001 = vmatprep.subr.mxu0 0.0
    %1002 = vmatpush1.msra.mxu0 0.0
    %1003 = vmatprep.subr.mxu0 0.0
    %1004 = vmatpush1.msra.mxu0 0.0
    %1005 = vmatprep.subr.mxu0 0.0
    %1006 = vmatpush1.msra.mxu0 0.0
    %1007 = vmatprep.subr.mxu0 0.0
    %1008 = vmatpush1.msra.mxu0 0.0
    %1009 = vmatprep.subr.mxu0 0.0
    %1010 = vmatpush1.msra.mxu0 0.0
    %1011 = vmatprep.subr.mxu0 0.0
    %1012 = vmatpush1.msra.mxu0 0.0
    %1013 = vmatprep.subr.mxu0 0.0
    %1014 = vmatpush1.msra.mxu0 0.0
    %1015 = vmatprep.subr.mxu0 0.0
    %1016 = vmatpush1.msra.mxu0 0.0
    %1017 = vmatprep.subr.mxu0 0.0
    %1018 = vmatpush1.msra.mxu0 0.0
    %1019 = vmatprep.subr.mxu0 0.0
    %1020 = vmatpush1.msra.mxu0 0.0
    %1021 = vmatprep.subr.mxu0 0.0
    %1022 = vmatpush1.msra.mxu0 0.0
    %1023 = vmatprep.subr.mxu0 0.0
    %1024 = vmatpush1.msra.mxu0 0.0
    %1025 = vmatprep.subr.mxu0 0.0
    %1026 = vmatpush1.msra.mxu0 0.0
    %1027 = vmatprep.subr.mxu0 0.0
    %1028 = vmatpush1.msra.mxu0 0.0
    %1029 = vmatprep.subr.mxu0 0.0
    %1030 = vmatpush1.msra.mxu0 0.0
    %1031 = vmatprep.subr.mxu0 0.0
    %1032 = vmatpush1.msra.mxu0 0.0
    %1033 = vmatprep.subr.mxu0 0.0
    %1034 = vmatpush1.msra.mxu0 0.0
    %1035 = vmatprep.subr.mxu0 0.0
    %1036 = vmatpush1.msra.mxu0 0.0
    %1037 = vmatprep.subr.mxu0 0.0
    %1038 = vmatpush1.msra.mxu0 0.0
    %1039 = vmatprep.subr.mxu0 0.0
    %1040 = vmatpush1.msra.mxu0 0.0
    %1041 = vmatprep.subr.mxu0 0.0
    %1042 = vmatpush1.msra.mxu0 0.0
    %1043 = vmatprep.mubr.f32.mxu0 0.0
    %1044 = vmatmul.mubr.f32.gmra.mrb[0].mxu0 %v906
    %v1045 = vpop.f32.mrb[0].mxu0
    %v1046 = vadd.f32 0.0, %v1045
    %v1047 = vpop.f32.mrb[0].mxu0
    %1048 = vdwg.mxu0
    %v1049 = vadd.f32 %v977, %v270
    %v1050 = vadd.f32 %v1046, %v272
    %v1051 = vtanh.pop %v1049
    %v1052 = vtanh.pop %v1050
    %1053 = vmatprep.subr.mxu0 0.0
    %1054 = vmatpush1.msra.mxu0 %v158
    %1055 = vmatprep.subr.mxu0 0.0
    %1056 = vmatpush1.msra.mxu0 %v159
    %1057 = vmatprep.subr.mxu0 0.0
    %1058 = vmatpush1.msra.mxu0 %v160
    %1059 = vmatprep.subr.mxu0 0.0
    %1060 = vmatpush1.msra.mxu0 %v161
    %1061 = vmatprep.subr.mxu0 0.0
    %1062 = vmatpush1.msra.mxu0 %v162
    %1063 = vmatprep.subr.mxu0 0.0
    %1064 = vmatpush1.msra.mxu0 %v163
    %1065 = vmatprep.subr.mxu0 0.0
    %1066 = vmatpush1.msra.mxu0 %v164
    %1067 = vmatprep.subr.mxu0 0.0
    %1068 = vmatpush1.msra.mxu0 %v165
    %1069 = vmatprep.subr.mxu0 0.0
    %1070 = vmatpush1.msra.mxu0 %v166
    %1071 = vmatprep.subr.mxu0 0.0
    %1072 = vmatpush1.msra.mxu0 %v167
    %1073 = vmatprep.subr.mxu0 0.0
    %1074 = vmatpush1.msra.mxu0 %v168
    %1075 = vmatprep.subr.mxu0 0.0
    %1076 = vmatpush1.msra.mxu0 %v169
    %1077 = vmatprep.subr.mxu0 0.0
    %1078 = vmatpush1.msra.mxu0 %v170
    %1079 = vmatprep.subr.mxu0 0.0
    %1080 = vmatpush1.msra.mxu0 %v171
    %1081 = vmatprep.subr.mxu0 0.0
    %1082 = vmatpush1.msra.mxu0 %v172
    %1083 = vmatprep.subr.mxu0 0.0
    %1084 = vmatpush1.msra.mxu0 %v173
    %1085 = vmatprep.subr.mxu0 0.0
    %1086 = vmatpush1.msra.mxu0 %v174
    %1087 = vmatprep.subr.mxu0 0.0
    %1088 = vmatpush1.msra.mxu0 %v175
    %1089 = vmatprep.subr.mxu0 0.0
    %1090 = vmatpush1.msra.mxu0 %v176
    %1091 = vmatprep.subr.mxu0 0.0
    %1092 = vmatpush1.msra.mxu0 %v177
    %1093 = vmatprep.subr.mxu0 0.0
    %1094 = vmatpush1.msra.mxu0 %v178
    %1095 = vmatprep.subr.mxu0 0.0
    %1096 = vmatpush1.msra.mxu0 %v179
    %1097 = vmatprep.subr.mxu0 0.0
    %1098 = vmatpush1.msra.mxu0 %v180
    %1099 = vmatprep.subr.mxu0 0.0
    %1100 = vmatpush1.msra.mxu0 %v181
    %1101 = vmatprep.subr.mxu0 0.0
    %1102 = vmatpush1.msra.mxu0 %v182
    %1103 = vmatprep.subr.mxu0 0.0
    %1104 = vmatpush1.msra.mxu0 %v183
    %1105 = vmatprep.subr.mxu0 0.0
    %1106 = vmatpush1.msra.mxu0 %v184
    %1107 = vmatprep.subr.mxu0 0.0
    %1108 = vmatpush1.msra.mxu0 %v185
    %1109 = vmatprep.subr.mxu0 0.0
    %1110 = vmatpush1.msra.mxu0 %v186
    %1111 = vmatprep.subr.mxu0 0.0
    %1112 = vmatpush1.msra.mxu0 %v187
    %1113 = vmatprep.subr.mxu0 0.0
    %1114 = vmatpush1.msra.mxu0 %v188
    %1115 = vmatprep.subr.mxu0 0.0
    %1116 = vmatpush1.msra.mxu0 %v189
    %1117 = vmatprep.mubr.f32.mxu0 %v1052
    %1118 = vmatmul.mubr.f32.gmra.mrb[0].mxu0 %v1051
    %v1119 = vpop.f32.mrb[0].mxu0
    %v1120 = vadd.f32 0.0, %v1119
    %v1121 = vpop.f32.mrb[0].mxu0
    %1122 = vdwg.mxu0
    %v1123 = vsel %vm567, %v1120, -inf
    %1124 = vmax.xlane.f32.xlu0 %v1123
    %v1125 = vpop.xlane.xlu0 %1124
    %v1126 = vsub.f32 %v1120, %v1125
    %v1127 = vmul.f32 %v1126, 1.442695
    %v1128 = vpow.pop %v1127
    %v1129 = vsel %vm567, %v1128, 0.0
    %1130 = vadd.xlane.f32.xlu0 %v1129
    %v1131 = vpop.xlane.xlu0 %1130
    %v1132 = vrcp.pop %v1131
    %v1133 = vmul.f32 %v1128, %v580
    %v1134 = vsel %vm567, %v1133, 0.0
    %1135 = vadd.xlane.f32.xlu0 %v1134
    %v1136 = vpop.xlane.xlu0 %1135
    %v1137 = vmul.f32 %v1136, %v1132
    %v1138 = vadd.f32 %v1137, %v347
    %1140 = vset.pattern.permute.xlu0 2
    %1141 = vperm.xlu0 %1140, %v1138
    %v1142 = vpop.permute.xlu0 %1141
    %v1144 = vmul.f32 %v1142, %v596
    %v1145 = vadd.f32 %v1144, %v975
    %v1146 = vadd.f32 %v1145, %v602
    %v1147 = vxor.u32 %v1146, 2147483648
    %v1148 = vmul.f32 %v1147, 1.442695
    %v1149 = vpow.pop %v1148
    %v1150 = vadd.f32 %v1149, 1.0
    %v1151 = vrcp.pop %v1150
    %v1152 = vmul.f32 1.0, %v1151
    %v1153 = vtanh.pop %v1146
    %v1154 = vmul.f32 %v1152, %v904
    %1156 = vrot.lane.b32.xlu0 %v1153, 64
    %v1157 = vpop.permute.xlu0 %1156
    %v1159 = vmul.f32 %v1152, %v1157
    %1161 = vrot.lane.b32.xlu0 %v1159, 32
    %v1162 = vpop.permute.xlu0 %1161
    %v1164 = vadd.f32 %v1154, %v1162
    %v1165 = vtanh.pop %v1164
    %1167 = vrot.lane.b32.xlu0 %v1165, 64
    %v1168 = vpop.permute.xlu0 %1167
    %v1170 = vmul.f32 %v1152, %v1168
    %1172 = vrot.lane.b32.xlu0 %v1170, 32
    %v1173 = vpop.permute.xlu0 %1172
    %v1175 = vsel %vm632, %v1173, %v1164
    %v1177 = vsel %vm348, %v1175, 0
    %1179 = vmatprep.subr.mxu0 %v71
    %1180 = vmatpush1.msra.mxu0 %v70
    %1181 = vmatprep.subr.mxu0 %v74
    %1182 = vmatpush1.msra.mxu0 %v73
    %1183 = vmatprep.subr.mxu0 %v77
    %1184 = vmatpush1.msra.mxu0 %v76
    %1185 = vmatprep.subr.mxu0 %v80
    %1186 = vmatpush1.msra.mxu0 %v79
    %1187 = vmatprep.subr.mxu0 %v83
    %1188 = vmatpush1.msra.mxu0 %v82
    %1189 = vmatprep.subr.mxu0 %v86
    %1190 = vmatpush1.msra.mxu0 %v85
    %1191 = vmatprep.subr.mxu0 %v89
    %1192 = vmatpush1.msra.mxu0 %v88
    %1193 = vmatprep.subr.mxu0 %v92
    %1194 = vmatpush1.msra.mxu0 %v91
    %1195 = vmatprep.subr.mxu0 0.0
    %1196 = vmatpush1.msra.mxu0 0.0
    %1197 = vmatprep.subr.mxu0 0.0
    %1198 = vmatpush1.msra.mxu0 0.0
    %1199 = vmatprep.subr.mxu0 0.0
    %1200 = vmatpush1.msra.mxu0 0.0
    %1201 = vmatprep.subr.mxu0 0.0
    %1202 = vmatpush1.msra.mxu0 0.0
    %1203 = vmatprep.subr.mxu0 0.0
    %1204 = vmatpush1.msra.mxu0 0.0
    %1205 = vmatprep.subr.mxu0 0.0
    %1206 = vmatpush1.msra.mxu0 0.0
    %1207 = vmatprep.subr.mxu0 0.0
    %1208 = vmatpush1.msra.mxu0 0.0
    %1209 = vmatprep.subr.mxu0 0.0
    %1210 = vmatpush1.msra.mxu0 0.0
    %1211 = vmatprep.subr.mxu0 0.0
    %1212 = vmatpush1.msra.mxu0 0.0
    %1213 = vmatprep.subr.mxu0 0.0
    %1214 = vmatpush1.msra.mxu0 0.0
    %1215 = vmatprep.subr.mxu0 0.0
    %1216 = vmatpush1.msra.mxu0 0.0
    %1217 = vmatprep.subr.mxu0 0.0
    %1218 = vmatpush1.msra.mxu0 0.0
    %1219 = vmatprep.subr.mxu0 0.0
    %1220 = vmatpush1.msra.mxu0 0.0
    %1221 = vmatprep.subr.mxu0 0.0
    %1222 = vmatpush1.msra.mxu0 0.0
    %1223 = vmatprep.subr.mxu0 0.0
    %1224 = vmatpush1.msra.mxu0 0.0
    %1225 = vmatprep.subr.mxu0 0.0
    %1226 = vmatpush1.msra.mxu0 0.0
    %1227 = vmatprep.subr.mxu0 0.0
    %1228 = vmatpush1.msra.mxu0 0.0
    %1229 = vmatprep.subr.mxu0 0.0
    %1230 = vmatpush1.msra.mxu0 0.0
    %1231 = vmatprep.subr.mxu0 0.0
    %1232 = vmatpush1.msra.mxu0 0.0
    %1233 = vmatprep.subr.mxu0 0.0
    %1234 = vmatpush1.msra.mxu0 0.0
    %1235 = vmatprep.subr.mxu0 0.0
    %1236 = vmatpush1.msra.mxu0 0.0
    %1237 = vmatprep.subr.mxu0 0.0
    %1238 = vmatpush1.msra.mxu0 0.0
    %1239 = vmatprep.subr.mxu0 0.0
    %1240 = vmatpush1.msra.mxu0 0.0
    %1241 = vmatprep.subr.mxu0 0.0
    %1242 = vmatpush1.msra.mxu0 0.0
    %1243 = vmatprep.mubr.f32.mxu0 0.0
    %1244 = vmatmul.mubr.f32.gmra.mrb[0].mxu0 %v1177
    %v1245 = vpop.f32.mrb[0].mxu0
    %v1246 = vadd.f32 0.0, %v1245
    %v1247 = vpop.f32.mrb[0].mxu0
    %v1248 = vadd.f32 0.0, %v1247
    %1249 = vdwg.mxu0
    %1250 = vmatprep.subr.mxu0 0.0
    %1251 = vmatpush1.msra.mxu0 %v72
    %1252 = vmatprep.subr.mxu0 0.0
    %1253 = vmatpush1.msra.mxu0 %v75
    %1254 = vmatprep.subr.mxu0 0.0
    %1255 = vmatpush1.msra.mxu0 %v78
    %1256 = vmatprep.subr.mxu0 0.0
    %1257 = vmatpush1.msra.mxu0 %v81
    %1258 = vmatprep.subr.mxu0 0.0
    %1259 = vmatpush1.msra.mxu0 %v84
    %1260 = vmatprep.subr.mxu0 0.0
    %1261 = vmatpush1.msra.mxu0 %v87
    %1262 = vmatprep.subr.mxu0 0.0
    %1263 = vmatpush1.msra.mxu0 %v90
    %1264 = vmatprep.subr.mxu0 0.0
    %1265 = vmatpush1.msra.mxu0 %v93
    %1266 = vmatprep.subr.mxu0 0.0
    %1267 = vmatpush1.msra.mxu0 0.0
    %1268 = vmatprep.subr.mxu0 0.0
    %1269 = vmatpush1.msra.mxu0 0.0
    %1270 = vmatprep.subr.mxu0 0.0
    %1271 = vmatpush1.msra.mxu0 0.0
    %1272 = vmatprep.subr.mxu0 0.0
    %1273 = vmatpush1.msra.mxu0 0.0
    %1274 = vmatprep.subr.mxu0 0.0
    %1275 = vmatpush1.msra.mxu0 0.0
    %1276 = vmatprep.subr.mxu0 0.0
    %1277 = vmatpush1.msra.mxu0 0.0
    %1278 = vmatprep.subr.mxu0 0.0
    %1279 = vmatpush1.msra.mxu0 0.0
    %1280 = vmatprep.subr.mxu0 0.0
    %1281 = vmatpush1.msra.mxu0 0.0
    %1282 = vmatprep.subr.mxu0 0.0
    %1283 = vmatpush1.msra.mxu0 0.0
    %1284 = vmatprep.subr.mxu0 0.0
    %1285 = vmatpush1.msra.mxu0 0.0
    %1286 = vmatprep.subr.mxu0 0.0
    %1287 = vmatpush1.msra.mxu0 0.0
    %1288 = vmatprep.subr.mxu0 0.0
    %1289 = vmatpush1.msra.mxu0 0.0
    %1290 = vmatprep.subr.mxu0 0.0
    %1291 = vmatpush1.msra.mxu0 0.0
    %1292 = vmatprep.subr.mxu0 0.0
    %1293 = vmatpush1.msra.mxu0 0.0
    %1294 = vmatprep.subr.mxu0 0.0
    %1295 = vmatpush1.msra.mxu0 0.0
    %1296 = vmatprep.subr.mxu0 0.0
    %1297 = vmatpush1.msra.mxu0 0.0
    %1298 = vmatprep.subr.mxu0 0.0
    %1299 = vmatpush1.msra.mxu0 0.0
    %1300 = vmatprep.subr.mxu0 0.0
    %1301 = vmatpush1.msra.mxu0 0.0
    %1302 = vmatprep.subr.mxu0 0.0
    %1303 = vmatpush1.msra.mxu0 0.0
    %1304 = vmatprep.subr.mxu0 0.0
    %1305 = vmatpush1.msra.mxu0 0.0
    %1306 = vmatprep.subr.mxu0 0.0
    %1307 = vmatpush1.msra.mxu0 0.0
    %1308 = vmatprep.subr.mxu0 0.0
    %1309 = vmatpush1.msra.mxu0 0.0
    %1310 = vmatprep.subr.mxu0 0.0
    %1311 = vmatpush1.msra.mxu0 0.0
    %1312 = vmatprep.subr.mxu0 0.0
    %1313 = vmatpush1.msra.mxu0 0.0
    %1314 = vmatprep.mubr.f32.mxu0 0.0
    %1315 = vmatmul.mubr.f32.gmra.mrb[0].mxu0 %v1177
    %v1316 = vpop.f32.mrb[0].mxu0
    %v1317 = vadd.f32 0.0, %v1316
    %v1318 = vpop.f32.mrb[0].mxu0
    %1319 = vdwg.mxu0
    %v1320 = vadd.f32 %v1248, %v270
    %v1321 = vadd.f32 %v1317, %v272
    %v1322 = vtanh.pop %v1320
    %v1323 = vtanh.pop %v1321
    %1324 = vmatprep.subr.mxu0 0.0
    %1325 = vmatpush1.msra.mxu0 %v158
    %1326 = vmatprep.subr.mxu0 0.0
    %1327 = vmatpush1.msra.mxu0 %v159
    %1328 = vmatprep.subr.mxu0 0.0
    %1329 = vmatpush1.msra.mxu0 %v160
    %1330 = vmatprep.subr.mxu0 0.0
    %1331 = vmatpush1.msra.mxu0 %v161
    %1332 = vmatprep.subr.mxu0 0.0
    %1333 = vmatpush1.msra.mxu0 %v162
    %1334 = vmatprep.subr.mxu0 0.0
    %1335 = vmatpush1.msra.mxu0 %v163
    %1336 = vmatprep.subr.mxu0 0.0
    %1337 = vmatpush1.msra.mxu0 %v164
    %1338 = vmatprep.subr.mxu0 0.0
    %1339 = vmatpush1.msra.mxu0 %v165
    %1340 = vmatprep.subr.mxu0 0.0
    %1341 = vmatpush1.msra.mxu0 %v166
    %1342 = vmatprep.subr.mxu0 0.0
    %1343 = vmatpush1.msra.mxu0 %v167
    %1344 = vmatprep.subr.mxu0 0.0
    %1345 = vmatpush1.msra.mxu0 %v168
    %1346 = vmatprep.subr.mxu0 0.0
    %1347 = vmatpush1.msra.mxu0 %v169
    %1348 = vmatprep.subr.mxu0 0.0
    %1349 = vmatpush1.msra.mxu0 %v170
    %1350 = vmatprep.subr.mxu0 0.0
    %1351 = vmatpush1.msra.mxu0 %v171
    %1352 = vmatprep.subr.mxu0 0.0
    %1353 = vmatpush1.msra.mxu0 %v172
    %1354 = vmatprep.subr.mxu0 0.0
    %1355 = vmatpush1.msra.mxu0 %v173
    %1356 = vmatprep.subr.mxu0 0.0
    %1357 = vmatpush1.msra.mxu0 %v174
    %1358 = vmatprep.subr.mxu0 0.0
    %1359 = vmatpush1.msra.mxu0 %v175
    %1360 = vmatprep.subr.mxu0 0.0
    %1361 = vmatpush1.msra.mxu0 %v176
    %1362 = vmatprep.subr.mxu0 0.0
    %1363 = vmatpush1.msra.mxu0 %v177
    %1364 = vmatprep.subr.mxu0 0.0
    %1365 = vmatpush1.msra.mxu0 %v178
    %1366 = vmatprep.subr.mxu0 0.0
    %1367 = vmatpush1.msra.mxu0 %v179
    %1368 = vmatprep.subr.mxu0 0.0
    %1369 = vmatpush1.msra.mxu0 %v180
    %1370 = vmatprep.subr.mxu0 0.0
    %1371 = vmatpush1.msra.mxu0 %v181
    %1372 = vmatprep.subr.mxu0 0.0
    %1373 = vmatpush1.msra.mxu0 %v182
    %1374 = vmatprep.subr.mxu0 0.0
    %1375 = vmatpush1.msra.mxu0 %v183
    %1376 = vmatprep.subr.mxu0 0.0
    %1377 = vmatpush1.msra.mxu0 %v184
    %1378 = vmatprep.subr.mxu0 0.0
    %1379 = vmatpush1.msra.mxu0 %v185
    %1380 = vmatprep.subr.mxu0 0.0
    %1381 = vmatpush1.msra.mxu0 %v186
    %1382 = vmatprep.subr.mxu0 0.0
    %1383 = vmatpush1.msra.mxu0 %v187
    %1384 = vmatprep.subr.mxu0 0.0
    %1385 = vmatpush1.msra.mxu0 %v188
    %1386 = vmatprep.subr.mxu0 0.0
    %1387 = vmatpush1.msra.mxu0 %v189
    %1388 = vmatprep.mubr.f32.mxu0 %v1323
    %1389 = vmatmul.mubr.f32.gmra.mrb[0].mxu0 %v1322
    %v1390 = vpop.f32.mrb[0].mxu0
    %v1391 = vadd.f32 0.0, %v1390
    %v1392 = vpop.f32.mrb[0].mxu0
    %1393 = vdwg.mxu0
    %v1394 = vsel %vm567, %v1391, -inf
    %1395 = vmax.xlane.f32.xlu0 %v1394
    %v1396 = vpop.xlane.xlu0 %1395
    %v1397 = vsub.f32 %v1391, %v1396
    %v1398 = vmul.f32 %v1397, 1.442695
    %v1399 = vpow.pop %v1398
    %v1400 = vsel %vm567, %v1399, 0.0
    %1401 = vadd.xlane.f32.xlu0 %v1400
    %v1402 = vpop.xlane.xlu0 %1401
    %v1403 = vrcp.pop %v1402
    %v1404 = vmul.f32 %v1399, %v580
    %v1405 = vsel %vm567, %v1404, 0.0
    %1406 = vadd.xlane.f32.xlu0 %v1405
    %v1407 = vpop.xlane.xlu0 %1406
    %v1408 = vmul.f32 %v1407, %v1403
    %v1409 = vadd.f32 %v1408, %v347
    %1411 = vset.pattern.permute.xlu0 3
    %1412 = vperm.xlu0 %1411, %v1409
    %v1413 = vpop.permute.xlu0 %1412
    %v1415 = vmul.f32 %v1413, %v596
    %v1416 = vadd.f32 %v1415, %v1246
    %v1417 = vadd.f32 %v1416, %v602
    %v1418 = vxor.u32 %v1417, 2147483648
    %v1419 = vmul.f32 %v1418, 1.442695
    %v1420 = vpow.pop %v1419
    %v1421 = vadd.f32 %v1420, 1.0
    %v1422 = vrcp.pop %v1421
    %v1423 = vmul.f32 1.0, %v1422
    %v1424 = vtanh.pop %v1417
    %v1425 = vmul.f32 %v1423, %v1175
    %1427 = vrot.lane.b32.xlu0 %v1424, 64
    %v1428 = vpop.permute.xlu0 %1427
    %v1430 = vmul.f32 %v1423, %v1428
    %1432 = vrot.lane.b32.xlu0 %v1430, 32
    %v1433 = vpop.permute.xlu0 %1432
    %v1435 = vadd.f32 %v1425, %v1433
    %v1436 = vtanh.pop %v1435
    %1438 = vrot.lane.b32.xlu0 %v1436, 64
    %v1439 = vpop.permute.xlu0 %1438
    %v1441 = vmul.f32 %v1423, %v1439
    %1443 = vrot.lane.b32.xlu0 %v1441, 32
    %v1444 = vpop.permute.xlu0 %1443
    %v1446 = vsel %vm632, %v1444, %v1435
    %v1448 = vsel %vm348, %v1446, 0
    %1450 = vmatprep.subr.mxu0 %v71
    %1451 = vmatpush1.msra.mxu0 %v70
    %1452 = vmatprep.subr.mxu0 %v74
    %1453 = vmatpush1.msra.mxu0 %v73
    %1454 = vmatprep.subr.mxu0 %v77
    %1455 = vmatpush1.msra.mxu0 %v76
    %1456 = vmatprep.subr.mxu0 %v80
    %1457 = vmatpush1.msra.mxu0 %v79
    %1458 = vmatprep.subr.mxu0 %v83
    %1459 = vmatpush1.msra.mxu0 %v82
    %1460 = vmatprep.subr.mxu0 %v86
    %1461 = vmatpush1.msra.mxu0 %v85
    %1462 = vmatprep.subr.mxu0 %v89
    %1463 = vmatpush1.msra.mxu0 %v88
    %1464 = vmatprep.subr.mxu0 %v92
    %1465 = vmatpush1.msra.mxu0 %v91
    %1466 = vmatprep.subr.mxu0 0.0
    %1467 = vmatpush1.msra.mxu0 0.0
    %1468 = vmatprep.subr.mxu0 0.0
    %1469 = vmatpush1.msra.mxu0 0.0
    %1470 = vmatprep.subr.mxu0 0.0
    %1471 = vmatpush1.msra.mxu0 0.0
    %1472 = vmatprep.subr.mxu0 0.0
    %1473 = vmatpush1.msra.mxu0 0.0
    %1474 = vmatprep.subr.mxu0 0.0
    %1475 = vmatpush1.msra.mxu0 0.0
    %1476 = vmatprep.subr.mxu0 0.0
    %1477 = vmatpush1.msra.mxu0 0.0
    %1478 = vmatprep.subr.mxu0 0.0
    %1479 = vmatpush1.msra.mxu0 0.0
    %1480 = vmatprep.subr.mxu0 0.0
    %1481 = vmatpush1.msra.mxu0 0.0
    %1482 = vmatprep.subr.mxu0 0.0
    %1483 = vmatpush1.msra.mxu0 0.0
    %1484 = vmatprep.subr.mxu0 0.0
    %1485 = vmatpush1.msra.mxu0 0.0
    %1486 = vmatprep.subr.mxu0 0.0
    %1487 = vmatpush1.msra.mxu0 0.0
    %1488 = vmatprep.subr.mxu0 0.0
    %1489 = vmatpush1.msra.mxu0 0.0
    %1490 = vmatprep.subr.mxu0 0.0
    %1491 = vmatpush1.msra.mxu0 0.0
    %1492 = vmatprep.subr.mxu0 0.0
    %1493 = vmatpush1.msra.mxu0 0.0
    %1494 = vmatprep.subr.mxu0 0.0
    %1495 = vmatpush1.msra.mxu0 0.0
    %1496 = vmatprep.subr.mxu0 0.0
    %1497 = vmatpush1.msra.mxu0 0.0
    %1498 = vmatprep.subr.mxu0 0.0
    %1499 = vmatpush1.msra.mxu0 0.0
    %1500 = vmatprep.subr.mxu0 0.0
    %1501 = vmatpush1.msra.mxu0 0.0
    %1502 = vmatprep.subr.mxu0 0.0
    %1503 = vmatpush1.msra.mxu0 0.0
    %1504 = vmatprep.subr.mxu0 0.0
    %1505 = vmatpush1.msra.mxu0 0.0
    %1506 = vmatprep.subr.mxu0 0.0
    %1507 = vmatpush1.msra.mxu0 0.0
    %1508 = vmatprep.subr.mxu0 0.0
    %1509 = vmatpush1.msra.mxu0 0.0
    %1510 = vmatprep.subr.mxu0 0.0
    %1511 = vmatpush1.msra.mxu0 0.0
    %1512 = vmatprep.subr.mxu0 0.0
    %1513 = vmatpush1.msra.mxu0 0.0
    %1514 = vmatprep.mubr.f32.mxu0 0.0
    %1515 = vmatmul.mubr.f32.gmra.mrb[0].mxu0 %v1448
    %v1516 = vpop.f32.mrb[0].mxu0
    %v1517 = vadd.f32 0.0, %v1516
    %v1518 = vpop.f32.mrb[0].mxu0
    %v1519 = vadd.f32 0.0, %v1518
    %1520 = vdwg.mxu0
    %1521 = vmatprep.subr.mxu0 0.0
    %1522 = vmatpush1.msra.mxu0 %v72
    %1523 = vmatprep.subr.mxu0 0.0
    %1524 = vmatpush1.msra.mxu0 %v75
    %1525 = vmatprep.subr.mxu0 0.0
    %1526 = vmatpush1.msra.mxu0 %v78
    %1527 = vmatprep.subr.mxu0 0.0
    %1528 = vmatpush1.msra.mxu0 %v81
    %1529 = vmatprep.subr.mxu0 0.0
    %1530 = vmatpush1.msra.mxu0 %v84
    %1531 = vmatprep.subr.mxu0 0.0
    %1532 = vmatpush1.msra.mxu0 %v87
    %1533 = vmatprep.subr.mxu0 0.0
    %1534 = vmatpush1.msra.mxu0 %v90
    %1535 = vmatprep.subr.mxu0 0.0
    %1536 = vmatpush1.msra.mxu0 %v93
    %1537 = vmatprep.subr.mxu0 0.0
    %1538 = vmatpush1.msra.mxu0 0.0
    %1539 = vmatprep.subr.mxu0 0.0
    %1540 = vmatpush1.msra.mxu0 0.0
    %1541 = vmatprep.subr.mxu0 0.0
    %1542 = vmatpush1.msra.mxu0 0.0
    %1543 = vmatprep.subr.mxu0 0.0
    %1544 = vmatpush1.msra.mxu0 0.0
    %1545 = vmatprep.subr.mxu0 0.0
    %1546 = vmatpush1.msra.mxu0 0.0
    %1547 = vmatprep.subr.mxu0 0.0
    %1548 = vmatpush1.msra.mxu0 0.0
    %1549 = vmatprep.subr.mxu0 0.0
    %1550 = vmatpush1.msra.mxu0 0.0
    %1551 = vmatprep.subr.mxu0 0.0
    %1552 = vmatpush1.msra.mxu0 0.0
    %1553 = vmatprep.subr.mxu0 0.0
    %1554 = vmatpush1.msra.mxu0 0.0
    %1555 = vmatprep.subr.mxu0 0.0
    %1556 = vmatpush1.msra.mxu0 0.0
    %1557 = vmatprep.subr.mxu0 0.0
    %1558 = vmatpush1.msra.mxu0 0.0
    %1559 = vmatprep.subr.mxu0 0.0
    %1560 = vmatpush1.msra.mxu0 0.0
    %1561 = vmatprep.subr.mxu0 0.0
    %1562 = vmatpush1.msra.mxu0 0.0
    %1563 = vmatprep.subr.mxu0 0.0
    %1564 = vmatpush1.msra.mxu0 0.0
    %1565 = vmatprep.subr.mxu0 0.0
    %1566 = vmatpush1.msra.mxu0 0.0
    %1567 = vmatprep.subr.mxu0 0.0
    %1568 = vmatpush1.msra.mxu0 0.0
    %1569 = vmatprep.subr.mxu0 0.0
    %1570 = vmatpush1.msra.mxu0 0.0
    %1571 = vmatprep.subr.mxu0 0.0
    %1572 = vmatpush1.msra.mxu0 0.0
    %1573 = vmatprep.subr.mxu0 0.0
    %1574 = vmatpush1.msra.mxu0 0.0
    %1575 = vmatprep.subr.mxu0 0.0
    %1576 = vmatpush1.msra.mxu0 0.0
    %1577 = vmatprep.subr.mxu0 0.0
    %1578 = vmatpush1.msra.mxu0 0.0
    %1579 = vmatprep.subr.mxu0 0.0
    %1580 = vmatpush1.msra.mxu0 0.0
    %1581 = vmatprep.subr.mxu0 0.0
    %1582 = vmatpush1.msra.mxu0 0.0
    %1583 = vmatprep.subr.mxu0 0.0
    %1584 = vmatpush1.msra.mxu0 0.0
    %1585 = vmatprep.mubr.f32.mxu0 0.0
    %1586 = vmatmul.mubr.f32.gmra.mrb[0].mxu0 %v1448
    %v1587 = vpop.f32.mrb[0].mxu0
    %v1588 = vadd.f32 0.0, %v1587
    %v1589 = vpop.f32.mrb[0].mxu0
    %1590 = vdwg.mxu0
    %v1591 = vadd.f32 %v1519, %v270
    %v1592 = vadd.f32 %v1588, %v272
    %v1593 = vtanh.pop %v1591
    %v1594 = vtanh.pop %v1592
    %1595 = vmatprep.subr.mxu0 0.0
    %1596 = vmatpush1.msra.mxu0 %v158
    %1597 = vmatprep.subr.mxu0 0.0
    %1598 = vmatpush1.msra.mxu0 %v159
    %1599 = vmatprep.subr.mxu0 0.0
    %1600 = vmatpush1.msra.mxu0 %v160
    %1601 = vmatprep.subr.mxu0 0.0
    %1602 = vmatpush1.msra.mxu0 %v161
    %1603 = vmatprep.subr.mxu0 0.0
    %1604 = vmatpush1.msra.mxu0 %v162
    %1605 = vmatprep.subr.mxu0 0.0
    %1606 = vmatpush1.msra.mxu0 %v163
    %1607 = vmatprep.subr.mxu0 0.0
    %1608 = vmatpush1.msra.mxu0 %v164
    %1609 = vmatprep.subr.mxu0 0.0
    %1610 = vmatpush1.msra.mxu0 %v165
    %1611 = vmatprep.subr.mxu0 0.0
    %1612 = vmatpush1.msra.mxu0 %v166
    %1613 = vmatprep.subr.mxu0 0.0
    %1614 = vmatpush1.msra.mxu0 %v167
    %1615 = vmatprep.subr.mxu0 0.0
    %1616 = vmatpush1.msra.mxu0 %v168
    %1617 = vmatprep.subr.mxu0 0.0
    %1618 = vmatpush1.msra.mxu0 %v169
    %1619 = vmatprep.subr.mxu0 0.0
    %1620 = vmatpush1.msra.mxu0 %v170
    %1621 = vmatprep.subr.mxu0 0.0
    %1622 = vmatpush1.msra.mxu0 %v171
    %1623 = vmatprep.subr.mxu0 0.0
    %1624 = vmatpush1.msra.mxu0 %v172
    %1625 = vmatprep.subr.mxu0 0.0
    %1626 = vmatpush1.msra.mxu0 %v173
    %1627 = vmatprep.subr.mxu0 0.0
    %1628 = vmatpush1.msra.mxu0 %v174
    %1629 = vmatprep.subr.mxu0 0.0
    %1630 = vmatpush1.msra.mxu0 %v175
    %1631 = vmatprep.subr.mxu0 0.0
    %1632 = vmatpush1.msra.mxu0 %v176
    %1633 = vmatprep.subr.mxu0 0.0
    %1634 = vmatpush1.msra.mxu0 %v177
    %1635 = vmatprep.subr.mxu0 0.0
    %1636 = vmatpush1.msra.mxu0 %v178
    %1637 = vmatprep.subr.mxu0 0.0
    %1638 = vmatpush1.msra.mxu0 %v179
    %1639 = vmatprep.subr.mxu0 0.0
    %1640 = vmatpush1.msra.mxu0 %v180
    %1641 = vmatprep.subr.mxu0 0.0
    %1642 = vmatpush1.msra.mxu0 %v181
    %1643 = vmatprep.subr.mxu0 0.0
    %1644 = vmatpush1.msra.mxu0 %v182
    %1645 = vmatprep.subr.mxu0 0.0
    %1646 = vmatpush1.msra.mxu0 %v183
    %1647 = vmatprep.subr.mxu0 0.0
    %1648 = vmatpush1.msra.mxu0 %v184
    %1649 = vmatprep.subr.mxu0 0.0
    %1650 = vmatpush1.msra.mxu0 %v185
    %1651 = vmatprep.subr.mxu0 0.0
    %1652 = vmatpush1.msra.mxu0 %v186
    %1653 = vmatprep.subr.mxu0 0.0
    %1654 = vmatpush1.msra.mxu0 %v187
    %1655 = vmatprep.subr.mxu0 0.0
    %1656 = vmatpush1.msra.mxu0 %v188
    %1657 = vmatprep.subr.mxu0 0.0
    %1658 = vmatpush1.msra.mxu0 %v189
    %1659 = vmatprep.mubr.f32.mxu0 %v1594
    %1660 = vmatmul.mubr.f32.gmra.mrb[0].mxu0 %v1593
    %v1661 = vpop.f32.mrb[0].mxu0
    %v1662 = vadd.f32 0.0, %v1661
    %v1663 = vpop.f32.mrb[0].mxu0
    %1664 = vdwg.mxu0
    %v1665 = vsel %vm567, %v1662, -inf
    %1666 = vmax.xlane.f32.xlu0 %v1665
    %v1667 = vpop.xlane.xlu0 %1666
    %v1668 = vsub.f32 %v1662, %v1667
    %v1669 = vmul.f32 %v1668, 1.442695
    %v1670 = vpow.pop %v1669
    %v1671 = vsel %vm567, %v1670, 0.0
    %1672 = vadd.xlane.f32.xlu0 %v1671
    %v1673 = vpop.xlane.xlu0 %1672
    %v1674 = vrcp.pop %v1673
    %v1675 = vmul.f32 %v1670, %v580
    %v1676 = vsel %vm567, %v1675, 0.0
    %1677 = vadd.xlane.f32.xlu0 %v1676
    %v1678 = vpop.xlane.xlu0 %1677
    %v1679 = vmul.f32 %v1678, %v1674
    %v1680 = vadd.f32 %v1679, %v347
    %1682 = vset.pattern.permute.xlu0 4
    %1683 = vperm.xlu0 %1682, %v1680
    %v1684 = vpop.permute.xlu0 %1683
    %v1686 = vmul.f32 %v1684, %v596
    %v1687 = vadd.f32 %v1686, %v1517
    %v1688 = vadd.f32 %v1687, %v602
    %v1689 = vxor.u32 %v1688, 2147483648
    %v1690 = vmul.f32 %v1689, 1.442695
    %v1691 = vpow.pop %v1690
    %v1692 = vadd.f32 %v1691, 1.0
    %v1693 = vrcp.pop %v1692
    %v1694 = vmul.f32 1.0, %v1693
    %v1695 = vtanh.pop %v1688
    %v1696 = vmul.f32 %v1694, %v1446
    %1698 = vrot.lane.b32.xlu0 %v1695, 64
    %v1699 = vpop.permute.xlu0 %1698
    %v1701 = vmul.f32 %v1694, %v1699
    %1703 = vrot.lane.b32.xlu0 %v1701, 32
    %v1704 = vpop.permute.xlu0 %1703
    %v1706 = vadd.f32 %v1696, %v1704
    %v1707 = vtanh.pop %v1706
    %1709 = vrot.lane.b32.xlu0 %v1707, 64
    %v1710 = vpop.permute.xlu0 %1709
    %v1712 = vmul.f32 %v1694, %v1710
    %1714 = vrot.lane.b32.xlu0 %v1712, 32
    %v1715 = vpop.permute.xlu0 %1714
    %v1717 = vsel %vm632, %v1715, %v1706
    %v1719 = vsel %vm348, %v1717, 0
    %1721 = vmatprep.subr.mxu0 %v71
    %1722 = vmatpush1.msra.mxu0 %v70
    %1723 = vmatprep.subr.mxu0 %v74
    %1724 = vmatpush1.msra.mxu0 %v73
    %1725 = vmatprep.subr.mxu0 %v77
    %1726 = vmatpush1.msra.mxu0 %v76
    %1727 = vmatprep.subr.mxu0 %v80
    %1728 = vmatpush1.msra.mxu0 %v79
    %1729 = vmatprep.subr.mxu0 %v83
    %1730 = vmatpush1.msra.mxu0 %v82
    %1731 = vmatprep.subr.mxu0 %v86
    %1732 = vmatpush1.msra.mxu0 %v85
    %1733 = vmatprep.subr.mxu0 %v89
    %1734 = vmatpush1.msra.mxu0 %v88
    %1735 = vmatprep.subr.mxu0 %v92
    %1736 = vmatpush1.msra.mxu0 %v91
    %1737 = vmatprep.subr.mxu0 0.0
    %1738 = vmatpush1.msra.mxu0 0.0
    %1739 = vmatprep.subr.mxu0 0.0
    %1740 = vmatpush1.msra.mxu0 0.0
    %1741 = vmatprep.subr.mxu0 0.0
    %1742 = vmatpush1.msra.mxu0 0.0
    %1743 = vmatprep.subr.mxu0 0.0
    %1744 = vmatpush1.msra.mxu0 0.0
    %1745 = vmatprep.subr.mxu0 0.0
    %1746 = vmatpush1.msra.mxu0 0.0
    %1747 = vmatprep.subr.mxu0 0.0
    %1748 = vmatpush1.msra.mxu0 0.0
    %1749 = vmatprep.subr.mxu0 0.0
    %1750 = vmatpush1.msra.mxu0 0.0
    %1751 = vmatprep.subr.mxu0 0.0
    %1752 = vmatpush1.msra.mxu0 0.0
    %1753 = vmatprep.subr.mxu0 0.0
    %1754 = vmatpush1.msra.mxu0 0.0
    %1755 = vmatprep.subr.mxu0 0.0
    %1756 = vmatpush1.msra.mxu0 0.0
    %1757 = vmatprep.subr.mxu0 0.0
    %1758 = vmatpush1.msra.mxu0 0.0
    %1759 = vmatprep.subr.mxu0 0.0
    %1760 = vmatpush1.msra.mxu0 0.0
    %1761 = vmatprep.subr.mxu0 0.0
    %1762 = vmatpush1.msra.mxu0 0.0
    %1763 = vmatprep.subr.mxu0 0.0
    %1764 = vmatpush1.msra.mxu0 0.0
    %1765 = vmatprep.subr.mxu0 0.0
    %1766 = vmatpush1.msra.mxu0 0.0
    %1767 = vmatprep.subr.mxu0 0.0
    %1768 = vmatpush1.msra.mxu0 0.0
    %1769 = vmatprep.subr.mxu0 0.0
    %1770 = vmatpush1.msra.mxu0 0.0
    %1771 = vmatprep.subr.mxu0 0.0
    %1772 = vmatpush1.msra.mxu0 0.0
    %1773 = vmatprep.subr.mxu0 0.0
    %1774 = vmatpush1.msra.mxu0 0.0
    %1775 = vmatprep.subr.mxu0 0.0
    %1776 = vmatpush1.msra.mxu0 0.0
    %1777 = vmatprep.subr.mxu0 0.0
    %1778 = vmatpush1.msra.mxu0 0.0
    %1779 = vmatprep.subr.mxu0 0.0
    %1780 = vmatpush1.msra.mxu0 0.0
    %1781 = vmatprep.subr.mxu0 0.0
    %1782 = vmatpush1.msra.mxu0 0.0
    %1783 = vmatprep.subr.mxu0 0.0
    %1784 = vmatpush1.msra.mxu0 0.0
    %1785 = vmatprep.mubr.f32.mxu0 0.0
    %1786 = vmatmul.mubr.f32.gmra.mrb[0].mxu0 %v1719
    %v1787 = vpop.f32.mrb[0].mxu0
    %v1788 = vadd.f32 0.0, %v1787
    %v1789 = vpop.f32.mrb[0].mxu0
    %v1790 = vadd.f32 0.0, %v1789
    %1791 = vdwg.mxu0
    %1792 = vmatprep.subr.mxu0 0.0
    %1793 = vmatpush1.msra.mxu0 %v72
    %1794 = vmatprep.subr.mxu0 0.0
    %1795 = vmatpush1.msra.mxu0 %v75
    %1796 = vmatprep.subr.mxu0 0.0
    %1797 = vmatpush1.msra.mxu0 %v78
    %1798 = vmatprep.subr.mxu0 0.0
    %1799 = vmatpush1.msra.mxu0 %v81
    %1800 = vmatprep.subr.mxu0 0.0
    %1801 = vmatpush1.msra.mxu0 %v84
    %1802 = vmatprep.subr.mxu0 0.0
    %1803 = vmatpush1.msra.mxu0 %v87
    %1804 = vmatprep.subr.mxu0 0.0
    %1805 = vmatpush1.msra.mxu0 %v90
    %1806 = vmatprep.subr.mxu0 0.0
    %1807 = vmatpush1.msra.mxu0 %v93
    %1808 = vmatprep.subr.mxu0 0.0
    %1809 = vmatpush1.msra.mxu0 0.0
    %1810 = vmatprep.subr.mxu0 0.0
    %1811 = vmatpush1.msra.mxu0 0.0
    %1812 = vmatprep.subr.mxu0 0.0
    %1813 = vmatpush1.msra.mxu0 0.0
    %1814 = vmatprep.subr.mxu0 0.0
    %1815 = vmatpush1.msra.mxu0 0.0
    %1816 = vmatprep.subr.mxu0 0.0
    %1817 = vmatpush1.msra.mxu0 0.0
    %1818 = vmatprep.subr.mxu0 0.0
    %1819 = vmatpush1.msra.mxu0 0.0
    %1820 = vmatprep.subr.mxu0 0.0
    %1821 = vmatpush1.msra.mxu0 0.0
    %1822 = vmatprep.subr.mxu0 0.0
    %1823 = vmatpush1.msra.mxu0 0.0
    %1824 = vmatprep.subr.mxu0 0.0
    %1825 = vmatpush1.msra.mxu0 0.0
    %1826 = vmatprep.subr.mxu0 0.0
    %1827 = vmatpush1.msra.mxu0 0.0
    %1828 = vmatprep.subr.mxu0 0.0
    %1829 = vmatpush1.msra.mxu0 0.0
    %1830 = vmatprep.subr.mxu0 0.0
    %1831 = vmatpush1.msra.mxu0 0.0
    %1832 = vmatprep.subr.mxu0 0.0
    %1833 = vmatpush1.msra.mxu0 0.0
    %1834 = vmatprep.subr.mxu0 0.0
    %1835 = vmatpush1.msra.mxu0 0.0
    %1836 = vmatprep.subr.mxu0 0.0
    %1837 = vmatpush1.msra.mxu0 0.0
    %1838 = vmatprep.subr.mxu0 0.0
    %1839 = vmatpush1.msra.mxu0 0.0
    %1840 = vmatprep.subr.mxu0 0.0
    %1841 = vmatpush1.msra.mxu0 0.0
    %1842 = vmatprep.subr.mxu0 0.0
    %1843 = vmatpush1.msra.mxu0 0.0
    %1844 = vmatprep.subr.mxu0 0.0
    %1845 = vmatpush1.msra.mxu0 0.0
    %1846 = vmatprep.subr.mxu0 0.0
    %1847 = vmatpush1.msra.mxu0 0.0
    %1848 = vmatprep.subr.mxu0 0.0
    %1849 = vmatpush1.msra.mxu0 0.0
    %1850 = vmatprep.subr.mxu0 0.0
    %1851 = vmatpush1.msra.mxu0 0.0
    %1852 = vmatprep.subr.mxu0 0.0
    %1853 = vmatpush1.msra.mxu0 0.0
    %1854 = vmatprep.subr.mxu0 0.0
    %1855 = vmatpush1.msra.mxu0 0.0
    %1856 = vmatprep.mubr.f32.mxu0 0.0
    %1857 = vmatmul.mubr.f32.gmra.mrb[0].mxu0 %v1719
    %v1858 = vpop.f32.mrb[0].mxu0
    %v1859 = vadd.f32 0.0, %v1858
    %v1860 = vpop.f32.mrb[0].mxu0
    %1861 = vdwg.mxu0
    %v1862 = vadd.f32 %v1790, %v270
    %v1863 = vadd.f32 %v1859, %v272
    %v1864 = vtanh.pop %v1862
    %v1865 = vtanh.pop %v1863
    %1866 = vmatprep.subr.mxu0 0.0
    %1867 = vmatpush1.msra.mxu0 %v158
    %1868 = vmatprep.subr.mxu0 0.0
    %1869 = vmatpush1.msra.mxu0 %v159
    %1870 = vmatprep.subr.mxu0 0.0
    %1871 = vmatpush1.msra.mxu0 %v160
    %1872 = vmatprep.subr.mxu0 0.0
    %1873 = vmatpush1.msra.mxu0 %v161
    %1874 = vmatprep.subr.mxu0 0.0
    %1875 = vmatpush1.msra.mxu0 %v162
    %1876 = vmatprep.subr.mxu0 0.0
    %1877 = vmatpush1.msra.mxu0 %v163
    %1878 = vmatprep.subr.mxu0 0.0
    %1879 = vmatpush1.msra.mxu0 %v164
    %1880 = vmatprep.subr.mxu0 0.0
    %1881 = vmatpush1.msra.mxu0 %v165
    %1882 = vmatprep.subr.mxu0 0.0
    %1883 = vmatpush1.msra.mxu0 %v166
    %1884 = vmatprep.subr.mxu0 0.0
    %1885 = vmatpush1.msra.mxu0 %v167
    %1886 = vmatprep.subr.mxu0 0.0
    %1887 = vmatpush1.msra.mxu0 %v168
    %1888 = vmatprep.subr.mxu0 0.0
    %1889 = vmatpush1.msra.mxu0 %v169
    %1890 = vmatprep.subr.mxu0 0.0
    %1891 = vmatpush1.msra.mxu0 %v170
    %1892 = vmatprep.subr.mxu0 0.0
    %1893 = vmatpush1.msra.mxu0 %v171
    %1894 = vmatprep.subr.mxu0 0.0
    %1895 = vmatpush1.msra.mxu0 %v172
    %1896 = vmatprep.subr.mxu0 0.0
    %1897 = vmatpush1.msra.mxu0 %v173
    %1898 = vmatprep.subr.mxu0 0.0
    %1899 = vmatpush1.msra.mxu0 %v174
    %1900 = vmatprep.subr.mxu0 0.0
    %1901 = vmatpush1.msra.mxu0 %v175
    %1902 = vmatprep.subr.mxu0 0.0
    %1903 = vmatpush1.msra.mxu0 %v176
    %1904 = vmatprep.subr.mxu0 0.0
    %1905 = vmatpush1.msra.mxu0 %v177
    %1906 = vmatprep.subr.mxu0 0.0
    %1907 = vmatpush1.msra.mxu0 %v178
    %1908 = vmatprep.subr.mxu0 0.0
    %1909 = vmatpush1.msra.mxu0 %v179
    %1910 = vmatprep.subr.mxu0 0.0
    %1911 = vmatpush1.msra.mxu0 %v180
    %1912 = vmatprep.subr.mxu0 0.0
    %1913 = vmatpush1.msra.mxu0 %v181
    %1914 = vmatprep.subr.mxu0 0.0
    %1915 = vmatpush1.msra.mxu0 %v182
    %1916 = vmatprep.subr.mxu0 0.0
    %1917 = vmatpush1.msra.mxu0 %v183
    %1918 = vmatprep.subr.mxu0 0.0
    %1919 = vmatpush1.msra.mxu0 %v184
    %1920 = vmatprep.subr.mxu0 0.0
    %1921 = vmatpush1.msra.mxu0 %v185
    %1922 = vmatprep.subr.mxu0 0.0
    %1923 = vmatpush1.msra.mxu0 %v186
    %1924 = vmatprep.subr.mxu0 0.0
    %1925 = vmatpush1.msra.mxu0 %v187
    %1926 = vmatprep.subr.mxu0 0.0
    %1927 = vmatpush1.msra.mxu0 %v188
    %1928 = vmatprep.subr.mxu0 0.0
    %1929 = vmatpush1.msra.mxu0 %v189
    %1930 = vmatprep.mubr.f32.mxu0 %v1865
    %1931 = vmatmul.mubr.f32.gmra.mrb[0].mxu0 %v1864
    %v1932 = vpop.f32.mrb[0].mxu0
    %v1933 = vadd.f32 0.0, %v1932
    %v1934 = vpop.f32.mrb[0].mxu0
    %1935 = vdwg.mxu0
    %v1936 = vsel %vm567, %v1933, -inf
    %1937 = vmax.xlane.f32.xlu0 %v1936
    %v1938 = vpop.xlane.xlu0 %1937
    %v1939 = vsub.f32 %v1933, %v1938
    %v1940 = vmul.f32 %v1939, 1.442695
    %v1941 = vpow.pop %v1940
    %v1942 = vsel %vm567, %v1941, 0.0
    %1943 = vadd.xlane.f32.xlu0 %v1942
    %v1944 = vpop.xlane.xlu0 %1943
    %v1945 = vrcp.pop %v1944
    %v1946 = vmul.f32 %v1941, %v580
    %v1947 = vsel %vm567, %v1946, 0.0
    %1948 = vadd.xlane.f32.xlu0 %v1947
    %v1949 = vpop.xlane.xlu0 %1948
    %v1950 = vmul.f32 %v1949, %v1945
    %v1951 = vadd.f32 %v1950, %v347
    %1953 = vset.pattern.permute.xlu0 5
    %1954 = vperm.xlu0 %1953, %v1951
    %v1955 = vpop.permute.xlu0 %1954
    %v1957 = vmul.f32 %v1955, %v596
    %v1958 = vadd.f32 %v1957, %v1788
    %v1959 = vadd.f32 %v1958, %v602
    %v1960 = vxor.u32 %v1959, 2147483648
    %v1961 = vmul.f32 %v1960, 1.442695
    %v1962 = vpow.pop %v1961
    %v1963 = vadd.f32 %v1962, 1.0
    %v1964 = vrcp.pop %v1963
    %v1965 = vmul.f32 1.0, %v1964
    %v1966 = vtanh.pop %v1959
    %v1967 = vmul.f32 %v1965, %v1717
    %1969 = vrot.lane.b32.xlu0 %v1966, 64
    %v1970 = vpop.permute.xlu0 %1969
    %v1972 = vmul.f32 %v1965, %v1970
    %1974 = vrot.lane.b32.xlu0 %v1972, 32
    %v1975 = vpop.permute.xlu0 %1974
    %v1977 = vadd.f32 %v1967, %v1975
    %v1978 = vtanh.pop %v1977
    %1980 = vrot.lane.b32.xlu0 %v1978, 64
    %v1981 = vpop.permute.xlu0 %1980
    %v1983 = vmul.f32 %v1965, %v1981
    %1985 = vrot.lane.b32.xlu0 %v1983, 32
    %v1986 = vpop.permute.xlu0 %1985
    %v1988 = vsel %vm632, %v1986, %v1977
    %v1990 = vsel %vm348, %v1988, 0
    %1992 = vmatprep.subr.mxu0 %v71
    %1993 = vmatpush1.msra.mxu0 %v70
    %1994 = vmatprep.subr.mxu0 %v74
    %1995 = vmatpush1.msra.mxu0 %v73
    %1996 = vmatprep.subr.mxu0 %v77
    %1997 = vmatpush1.msra.mxu0 %v76
    %1998 = vmatprep.subr.mxu0 %v80
    %1999 = vmatpush1.msra.mxu0 %v79
    %2000 = vmatprep.subr.mxu0 %v83
    %2001 = vmatpush1.msra.mxu0 %v82
    %2002 = vmatprep.subr.mxu0 %v86
    %2003 = vmatpush1.msra.mxu0 %v85
    %2004 = vmatprep.subr.mxu0 %v89
    %2005 = vmatpush1.msra.mxu0 %v88
    %2006 = vmatprep.subr.mxu0 %v92
    %2007 = vmatpush1.msra.mxu0 %v91
    %2008 = vmatprep.subr.mxu0 0.0
    %2009 = vmatpush1.msra.mxu0 0.0
    %2010 = vmatprep.subr.mxu0 0.0
    %2011 = vmatpush1.msra.mxu0 0.0
    %2012 = vmatprep.subr.mxu0 0.0
    %2013 = vmatpush1.msra.mxu0 0.0
    %2014 = vmatprep.subr.mxu0 0.0
    %2015 = vmatpush1.msra.mxu0 0.0
    %2016 = vmatprep.subr.mxu0 0.0
    %2017 = vmatpush1.msra.mxu0 0.0
    %2018 = vmatprep.subr.mxu0 0.0
    %2019 = vmatpush1.msra.mxu0 0.0
    %2020 = vmatprep.subr.mxu0 0.0
    %2021 = vmatpush1.msra.mxu0 0.0
    %2022 = vmatprep.subr.mxu0 0.0
    %2023 = vmatpush1.msra.mxu0 0.0
    %2024 = vmatprep.subr.mxu0 0.0
    %2025 = vmatpush1.msra.mxu0 0.0
    %2026 = vmatprep.subr.mxu0 0.0
    %2027 = vmatpush1.msra.mxu0 0.0
    %2028 = vmatprep.subr.mxu0 0.0
    %2029 = vmatpush1.msra.mxu0 0.0
    %2030 = vmatprep.subr.mxu0 0.0
    %2031 = vmatpush1.msra.mxu0 0.0
    %2032 = vmatprep.subr.mxu0 0.0
    %2033 = vmatpush1.msra.mxu0 0.0
    %2034 = vmatprep.subr.mxu0 0.0
    %2035 = vmatpush1.msra.mxu0 0.0
    %2036 = vmatprep.subr.mxu0 0.0
    %2037 = vmatpush1.msra.mxu0 0.0
    %2038 = vmatprep.subr.mxu0 0.0
    %2039 = vmatpush1.msra.mxu0 0.0
    %2040 = vmatprep.subr.mxu0 0.0
    %2041 = vmatpush1.msra.mxu0 0.0
    %2042 = vmatprep.subr.mxu0 0.0
    %2043 = vmatpush1.msra.mxu0 0.0
    %2044 = vmatprep.subr.mxu0 0.0
    %2045 = vmatpush1.msra.mxu0 0.0
    %2046 = vmatprep.subr.mxu0 0.0
    %2047 = vmatpush1.msra.mxu0 0.0
    %2048 = vmatprep.subr.mxu0 0.0
    %2049 = vmatpush1.msra.mxu0 0.0
    %2050 = vmatprep.subr.mxu0 0.0
    %2051 = vmatpush1.msra.mxu0 0.0
    %2052 = vmatprep.subr.mxu0 0.0
    %2053 = vmatpush1.msra.mxu0 0.0
    %2054 = vmatprep.subr.mxu0 0.0
    %2055 = vmatpush1.msra.mxu0 0.0
    %2056 = vmatprep.mubr.f32.mxu0 0.0
    %2057 = vmatmul.mubr.f32.gmra.mrb[0].mxu0 %v1990
    %v2058 = vpop.f32.mrb[0].mxu0
    %v2059 = vadd.f32 0.0, %v2058
    %v2060 = vpop.f32.mrb[0].mxu0
    %v2061 = vadd.f32 0.0, %v2060
    %2062 = vdwg.mxu0
    %2063 = vmatprep.subr.mxu0 0.0
    %2064 = vmatpush1.msra.mxu0 %v72
    %2065 = vmatprep.subr.mxu0 0.0
    %2066 = vmatpush1.msra.mxu0 %v75
    %2067 = vmatprep.subr.mxu0 0.0
    %2068 = vmatpush1.msra.mxu0 %v78
    %2069 = vmatprep.subr.mxu0 0.0
    %2070 = vmatpush1.msra.mxu0 %v81
    %2071 = vmatprep.subr.mxu0 0.0
    %2072 = vmatpush1.msra.mxu0 %v84
    %2073 = vmatprep.subr.mxu0 0.0
    %2074 = vmatpush1.msra.mxu0 %v87
    %2075 = vmatprep.subr.mxu0 0.0
    %2076 = vmatpush1.msra.mxu0 %v90
    %2077 = vmatprep.subr.mxu0 0.0
    %2078 = vmatpush1.msra.mxu0 %v93
    %2079 = vmatprep.subr.mxu0 0.0
    %2080 = vmatpush1.msra.mxu0 0.0
    %2081 = vmatprep.subr.mxu0 0.0
    %2082 = vmatpush1.msra.mxu0 0.0
    %2083 = vmatprep.subr.mxu0 0.0
    %2084 = vmatpush1.msra.mxu0 0.0
    %2085 = vmatprep.subr.mxu0 0.0
    %2086 = vmatpush1.msra.mxu0 0.0
    %2087 = vmatprep.subr.mxu0 0.0
    %2088 = vmatpush1.msra.mxu0 0.0
    %2089 = vmatprep.subr.mxu0 0.0
    %2090 = vmatpush1.msra.mxu0 0.0
    %2091 = vmatprep.subr.mxu0 0.0
    %2092 = vmatpush1.msra.mxu0 0.0
    %2093 = vmatprep.subr.mxu0 0.0
    %2094 = vmatpush1.msra.mxu0 0.0
    %2095 = vmatprep.subr.mxu0 0.0
    %2096 = vmatpush1.msra.mxu0 0.0
    %2097 = vmatprep.subr.mxu0 0.0
    %2098 = vmatpush1.msra.mxu0 0.0
    %2099 = vmatprep.subr.mxu0 0.0
    %2100 = vmatpush1.msra.mxu0 0.0
    %2101 = vmatprep.subr.mxu0 0.0
    %2102 = vmatpush1.msra.mxu0 0.0
    %2103 = vmatprep.subr.mxu0 0.0
    %2104 = vmatpush1.msra.mxu0 0.0
    %2105 = vmatprep.subr.mxu0 0.0
    %2106 = vmatpush1.msra.mxu0 0.0
    %2107 = vmatprep.subr.mxu0 0.0
    %2108 = vmatpush1.msra.mxu0 0.0
    %2109 = vmatprep.subr.mxu0 0.0
    %2110 = vmatpush1.msra.mxu0 0.0
    %2111 = vmatprep.subr.mxu0 0.0
    %2112 = vmatpush1.msra.mxu0 0.0
    %2113 = vmatprep.subr.mxu0 0.0
    %2114 = vmatpush1.msra.mxu0 0.0
    %2115 = vmatprep.subr.mxu0 0.0
    %2116 = vmatpush1.msra.mxu0 0.0
    %2117 = vmatprep.subr.mxu0 0.0
    %2118 = vmatpush1.msra.mxu0 0.0
    %2119 = vmatprep.subr.mxu0 0.0
    %2120 = vmatpush1.msra.mxu0 0.0
    %2121 = vmatprep.subr.mxu0 0.0
    %2122 = vmatpush1.msra.mxu0 0.0
    %2123 = vmatprep.subr.mxu0 0.0
    %2124 = vmatpush1.msra.mxu0 0.0
    %2125 = vmatprep.subr.mxu0 0.0
    %2126 = vmatpush1.msra.mxu0 0.0
    %2127 = vmatprep.mubr.f32.mxu0 0.0
    %2128 = vmatmul.mubr.f32.gmra.mrb[0].mxu0 %v1990
    %v2129 = vpop.f32.mrb[0].mxu0
    %v2130 = vadd.f32 0.0, %v2129
    %v2131 = vpop.f32.mrb[0].mxu0
    %2132 = vdwg.mxu0
    %v2133 = vadd.f32 %v2061, %v270
    %v2134 = vadd.f32 %v2130, %v272
    %v2135 = vtanh.pop %v2133
    %v2136 = vtanh.pop %v2134
    %2137 = vmatprep.subr.mxu0 0.0
    %2138 = vmatpush1.msra.mxu0 %v158
    %2139 = vmatprep.subr.mxu0 0.0
    %2140 = vmatpush1.msra.mxu0 %v159
    %2141 = vmatprep.subr.mxu0 0.0
    %2142 = vmatpush1.msra.mxu0 %v160
    %2143 = vmatprep.subr.mxu0 0.0
    %2144 = vmatpush1.msra.mxu0 %v161
    %2145 = vmatprep.subr.mxu0 0.0
    %2146 = vmatpush1.msra.mxu0 %v162
    %2147 = vmatprep.subr.mxu0 0.0
    %2148 = vmatpush1.msra.mxu0 %v163
    %2149 = vmatprep.subr.mxu0 0.0
    %2150 = vmatpush1.msra.mxu0 %v164
    %2151 = vmatprep.subr.mxu0 0.0
    %2152 = vmatpush1.msra.mxu0 %v165
    %2153 = vmatprep.subr.mxu0 0.0
    %2154 = vmatpush1.msra.mxu0 %v166
    %2155 = vmatprep.subr.mxu0 0.0
    %2156 = vmatpush1.msra.mxu0 %v167
    %2157 = vmatprep.subr.mxu0 0.0
    %2158 = vmatpush1.msra.mxu0 %v168
    %2159 = vmatprep.subr.mxu0 0.0
    %2160 = vmatpush1.msra.mxu0 %v169
    %2161 = vmatprep.subr.mxu0 0.0
    %2162 = vmatpush1.msra.mxu0 %v170
    %2163 = vmatprep.subr.mxu0 0.0
    %2164 = vmatpush1.msra.mxu0 %v171
    %2165 = vmatprep.subr.mxu0 0.0
    %2166 = vmatpush1.msra.mxu0 %v172
    %2167 = vmatprep.subr.mxu0 0.0
    %2168 = vmatpush1.msra.mxu0 %v173
    %2169 = vmatprep.subr.mxu0 0.0
    %2170 = vmatpush1.msra.mxu0 %v174
    %2171 = vmatprep.subr.mxu0 0.0
    %2172 = vmatpush1.msra.mxu0 %v175
    %2173 = vmatprep.subr.mxu0 0.0
    %2174 = vmatpush1.msra.mxu0 %v176
    %2175 = vmatprep.subr.mxu0 0.0
    %2176 = vmatpush1.msra.mxu0 %v177
    %2177 = vmatprep.subr.mxu0 0.0
    %2178 = vmatpush1.msra.mxu0 %v178
    %2179 = vmatprep.subr.mxu0 0.0
    %2180 = vmatpush1.msra.mxu0 %v179
    %2181 = vmatprep.subr.mxu0 0.0
    %2182 = vmatpush1.msra.mxu0 %v180
    %2183 = vmatprep.subr.mxu0 0.0
    %2184 = vmatpush1.msra.mxu0 %v181
    %2185 = vmatprep.subr.mxu0 0.0
    %2186 = vmatpush1.msra.mxu0 %v182
    %2187 = vmatprep.subr.mxu0 0.0
    %2188 = vmatpush1.msra.mxu0 %v183
    %2189 = vmatprep.subr.mxu0 0.0
    %2190 = vmatpush1.msra.mxu0 %v184
    %2191 = vmatprep.subr.mxu0 0.0
    %2192 = vmatpush1.msra.mxu0 %v185
    %2193 = vmatprep.subr.mxu0 0.0
    %2194 = vmatpush1.msra.mxu0 %v186
    %2195 = vmatprep.subr.mxu0 0.0
    %2196 = vmatpush1.msra.mxu0 %v187
    %2197 = vmatprep.subr.mxu0 0.0
    %2198 = vmatpush1.msra.mxu0 %v188
    %2199 = vmatprep.subr.mxu0 0.0
    %2200 = vmatpush1.msra.mxu0 %v189
    %2201 = vmatprep.mubr.f32.mxu0 %v2136
    %2202 = vmatmul.mubr.f32.gmra.mrb[0].mxu0 %v2135
    %v2203 = vpop.f32.mrb[0].mxu0
    %v2204 = vadd.f32 0.0, %v2203
    %v2205 = vpop.f32.mrb[0].mxu0
    %2206 = vdwg.mxu0
    %v2207 = vsel %vm567, %v2204, -inf
    %2208 = vmax.xlane.f32.xlu0 %v2207
    %v2209 = vpop.xlane.xlu0 %2208
    %v2210 = vsub.f32 %v2204, %v2209
    %v2211 = vmul.f32 %v2210, 1.442695
    %v2212 = vpow.pop %v2211
    %v2213 = vsel %vm567, %v2212, 0.0
    %2214 = vadd.xlane.f32.xlu0 %v2213
    %v2215 = vpop.xlane.xlu0 %2214
    %v2216 = vrcp.pop %v2215
    %v2217 = vmul.f32 %v2212, %v580
    %v2218 = vsel %vm567, %v2217, 0.0
    %2219 = vadd.xlane.f32.xlu0 %v2218
    %v2220 = vpop.xlane.xlu0 %2219
    %v2221 = vmul.f32 %v2220, %v2216
    %v2222 = vadd.f32 %v2221, %v347
    %2224 = vset.pattern.permute.xlu0 6
    %2225 = vperm.xlu0 %2224, %v2222
    %v2226 = vpop.permute.xlu0 %2225
    %v2228 = vmul.f32 %v2226, %v596
    %v2229 = vadd.f32 %v2228, %v2059
    %v2230 = vadd.f32 %v2229, %v602
    %v2231 = vxor.u32 %v2230, 2147483648
    %v2232 = vmul.f32 %v2231, 1.442695
    %v2233 = vpow.pop %v2232
    %v2234 = vadd.f32 %v2233, 1.0
    %v2235 = vrcp.pop %v2234
    %v2236 = vmul.f32 1.0, %v2235
    %v2237 = vtanh.pop %v2230
    %v2238 = vmul.f32 %v2236, %v1988
    %2240 = vrot.lane.b32.xlu0 %v2237, 64
    %v2241 = vpop.permute.xlu0 %2240
    %v2243 = vmul.f32 %v2236, %v2241
    %2245 = vrot.lane.b32.xlu0 %v2243, 32
    %v2246 = vpop.permute.xlu0 %2245
    %v2248 = vadd.f32 %v2238, %v2246
    %v2249 = vtanh.pop %v2248
    %2251 = vrot.lane.b32.xlu0 %v2249, 64
    %v2252 = vpop.permute.xlu0 %2251
    %v2254 = vmul.f32 %v2236, %v2252
    %2256 = vrot.lane.b32.xlu0 %v2254, 32
    %v2257 = vpop.permute.xlu0 %2256
    %v2259 = vsel %vm632, %v2257, %v2248
    %v2260 = vlaneseq
    %v2261 = vshrl.u32 %v2260, 7
    %v2262 = vsub.s32 3, %v2261
    %v2263 = vrot.slane %v190, %v2262
    %v2264 = vmul.f32 %v2259, %v2263
    %v2265 = vsel %vm632, %v2264, 0.0
    %2266 = vadd.xlane.f32.xlu0 %v2265
    %v2267 = vpop.xlane.xlu0 %2266
    %2268 = vrot.lane.b32.xlu0 %v341, 112
    %v2269 = vpop.permute.xlu0 %2268
    %v2271 = vmul.f32 %v2212, %v2269
    %v2272 = vsel %vm567, %v2271, 0.0
    %2273 = vadd.xlane.f32.xlu0 %v2272
    %v2274 = vpop.xlane.xlu0 %2273
    %v2275 = vmul.f32 %v2274, %v2216
    %v2276 = vadd.f32 %v2267, %v2275
    %v2277 = vstv %s194
    %v2278 = vadd.f32 %v2276, %v2277
    %vm2279 = vcmask 7168
    %2280 = vst.msk [vmem:[%s4] sm:$0xff] %vm2279, %v2278
    // Predicated region
    $region34: #{tpu_custom_call.1} parent=1 // pred_check
      _
    $region35: #{tpu_custom_call.1} parent=1 // pred_check_branch
      %2282 = sbr.rel (0) target = $region37
    $region36: #{tpu_custom_call.1} parent=1 // pred_region
      _
    $region37: #{tpu_custom_call.1} parent=1 // pred_fallthru
      _
    // Predicated region
    $region38: #{tpu_custom_call.1} parent=1 // pred_check
      _
    $region39: #{tpu_custom_call.1} parent=1 // pred_check_branch
      %2284 = sbr.rel (0) target = $region41
    $region40: #{tpu_custom_call.1} parent=1 // pred_region
      _
    $region41: #{tpu_custom_call.1} parent=1 // pred_fallthru
      _
    %2285 = vsyncpa [#allocation3], 1
    %2286 = vsyncpa [#allocation6], 1
    %2287 = vsyncpa [#allocation4], 1

</llo_original>
